<compile_context>
chip_gen: v7x
topology: tpu7x:2x2x1
jax: 0.10.0
libtpu: 0.0.40
codegen_flags: <defaults>
</compile_context>

<pallas_src>
import functools

import jax
import jax.numpy as jnp
from jax.experimental import pallas as pl
from jax.experimental.pallas import tpu as pltpu

BN_EPS = 1e-5


def _round_up(x, m):
    return (x + m - 1) // m * m


# ---------------------------------------------------------------------------
# Kernel A: MaxPool2d(2) (+ baked conv padding) + Conv3x3 (no bias)
#           + per-image BN1 partial sums packed into slack lanes.
# ---------------------------------------------------------------------------
def _pool_conv1_kernel(x_ref, se_ref, so_ref, te_ref, to_ref, w_ref, mask_ref,
                       y_ref, *, bt, cin, hp, wp, lpp, tail):
    wpad = wp + 2
    span = (hp - 1) * wpad + wp
    lpad = (hp + 2) * wpad

    # -- MaxPool2d(2): both window rows live on the lane axis of the free
    #    (Cin*hp, 2W) layout, so 4 tiny selection matmuls + max do the pool and
    #    bake the left/right zero padding of the 3x3 "same" conv into the result.
    xall = x_ref[...].reshape(bt * cin * hp, 4 * wp)           # (Bt*Cin*hp, 2W)
    pooled = jnp.maximum(
        jnp.maximum(
            jnp.dot(xall, se_ref[...], preferred_element_type=jnp.float32),
            jnp.dot(xall, so_ref[...], preferred_element_type=jnp.float32)),
        jnp.maximum(
            jnp.dot(xall, te_ref[...], preferred_element_type=jnp.float32),
            jnp.dot(xall, to_ref[...], preferred_element_type=jnp.float32)))
    p4 = pooled.reshape(bt, cin, hp, wpad)                     # rows already width-padded

    # -- assemble the padded flat activation once as a value (no scratch, no
    #    per-step zero fill): per image [top pad row | hp rows | bottom pad + slack],
    #    images stacked on the lane axis.
    zrow = jnp.zeros((cin, wpad), jnp.float32)
    ztail = jnp.zeros((cin, lpp - lpad + wpad), jnp.float32)
    pieces = []
    for b in range(bt):
        pieces.append(zrow)
        for i in range(hp):
            pieces.append(p4[b, :, i, :])
        pieces.append(ztail)
    pieces.append(jnp.zeros((cin, tail), jnp.float32))         # halo for tap shifts
    a = jnp.concatenate(pieces, axis=1)                        # (Cin, Bt*LPP + tail)

    # -- im2col: 9 contiguous lane slices -> ONE MXU matmul, K = 9*Cin --
    taps = [a[:, ky * wpad + kx: ky * wpad + kx + bt * lpp]
            for ky in range(3) for kx in range(3)]
    xcol = jnp.concatenate(taps, axis=0)                       # (9*Cin, Bt*LPP)
    y = jnp.dot(w_ref[...], xcol, preferred_element_type=jnp.float32)   # (Cmid, Bt*LPP)

    mask = mask_ref[...]                                       # (1, LPP)
    for b in range(bt):
        ym = y[:, b * lpp:(b + 1) * lpp] * mask                # zero junk / padding lanes
        y_ref[b] = ym                                          # lane-dense unmasked store
        blk = ym[:, :span]
        s1 = jnp.sum(blk, axis=1, keepdims=True)
        s2 = jnp.sum(blk * blk, axis=1, keepdims=True)
        # pack per-image BN partial sums into the segment's slack lanes
        y_ref[b, :, span:span + 2] = jnp.concatenate([s1, s2], axis=1)


# ---------------------------------------------------------------------------
# Kernel B: fused BN1 (scale/bias) + ReLU + Conv3x3 + per-image BN2 partial sums.
# ---------------------------------------------------------------------------
def _bn_conv2_kernel(y1_ref, sc_ref, bi_ref, w_ref, mask_ref, y_ref,
                     *, bt, cmid, hp, wp, lpp, tail):
    wpad = wp + 2
    span = (hp - 1) * wpad + wp
    scale = sc_ref[...]                                        # (Cmid, 1)
    bias = bi_ref[...]
    mask = mask_ref[...]                                       # (1, LPP)

    # y1 is stored in flat-span layout with junk lanes zeroed, so the padded input
    # for conv2 is just [wpad+1 zeros | valid span | zeros] per image: no scratch,
    # no per-row stores, only 3 lane slices per image.
    zpre = jnp.zeros((cmid, wpad + 1), jnp.float32)
    zpost = jnp.zeros((cmid, lpp - (wpad + 1) - span), jnp.float32)
    pieces = []
    for b in range(bt):
        a_b = jnp.maximum(y1_ref[b] * scale + bias, 0.0) * mask   # fused BN1 + ReLU
        pieces.append(zpre)
        pieces.append(a_b[:, :span])
        pieces.append(zpost)
    pieces.append(jnp.zeros((cmid, tail), jnp.float32))
    a = jnp.concatenate(pieces, axis=1)                        # (Cmid, Bt*LPP + tail)

    taps = [a[:, ky * wpad + kx: ky * wpad + kx + bt * lpp]
            for ky in range(3) for kx in range(3)]
    xcol = jnp.concatenate(taps, axis=0)                       # (9*Cmid, Bt*LPP)
    y = jnp.dot(w_ref[...], xcol, preferred_element_type=jnp.float32)   # (Cout, Bt*LPP)

    for b in range(bt):
        ym = y[:, b * lpp:(b + 1) * lpp] * mask
        y_ref[b] = ym
        blk = ym[:, :span]
        s1 = jnp.sum(blk, axis=1, keepdims=True)
        s2 = jnp.sum(blk * blk, axis=1, keepdims=True)
        y_ref[b, :, span:span + 2] = jnp.concatenate([s1, s2], axis=1)


# ---------------------------------------------------------------------------
# Kernel C: fused BN2 (scale/bias) + ReLU + de-pad (hp lane slices per image).
# ---------------------------------------------------------------------------
def _bn_relu_depad_kernel(y2_ref, sc_ref, bi_ref, o_ref, *, bt, hp, wp):
    wpad = wp + 2
    scale = sc_ref[...]
    bias = bi_ref[...]
    for b in range(bt):
        a = jnp.maximum(y2_ref[b] * scale + bias, 0.0)         # (Cout, LPP)
        o_ref[b] = jnp.concatenate(
            [a[:, i * wpad: i * wpad + wp] for i in range(hp)], axis=1)


# ---------------------------------------------------------------------------
# Host-side constants / helpers (tiny, constant-folded under jit).
# ---------------------------------------------------------------------------
def _pool_selectors(w, wp):
    """Four (2W, wp+2) 0/1 selectors; output cols 0 and wp+1 are zero (conv padding)."""
    l = jnp.arange(2 * w)[:, None]
    jj = jnp.arange(wp + 2)[None, :]
    valid = (jj >= 1) & (jj <= wp)
    j = jj - 1
    se = ((l == 2 * j) & valid).astype(jnp.float32)
    so = ((l == 2 * j + 1) & valid).astype(jnp.float32)
    te = ((l == w + 2 * j) & valid).astype(jnp.float32)
    to = ((l == w + 2 * j + 1) & valid).astype(jnp.float32)
    return se, so, te, to


def _span_mask(hp, wp, lpp):
    wpad = wp + 2
    span = (hp - 1) * wpad + wp
    p = jnp.arange(lpp)
    return ((p < span) & ((p % wpad) < wp)).astype(jnp.float32)[None, :]   # (1, LPP)


def _fold_bn(stats, gamma, beta, count):
    """stats: (N, C, 2) per-image (sum, sumsq) -> fused per-channel scale/bias."""
    s = jnp.sum(stats.astype(jnp.float32), axis=0)
    mean = s[:, 0] / count
    var = jnp.maximum(s[:, 1] / count - mean * mean, 0.0)   # biased var, clamped >= 0
    scale = gamma * jax.lax.rsqrt(var + BN_EPS)
    bias = beta - mean * scale
    return scale[:, None].astype(jnp.float32), bias[:, None].astype(jnp.float32)


def _rep_spec(arr):
    nd = arr.ndim
    return pl.BlockSpec(arr.shape, lambda t, _nd=nd: (0,) * _nd)


def _pick_bt(n):
    # keep >=2 grid steps when possible (megacore / pipelining), else stack all
    # images on the lane axis of a single step.
    for b in (8, 4, 2, 1):
        if n % b == 0 and n // b >= 2:
            return b
    return n


def _vmem_limit_bytes():
    try:
        return int(pltpu.get_tpu_info().vmem_capacity_bytes * 0.45)
    except Exception:
        return None


# ---------------------------------------------------------------------------
# Wrapper: Down_sampling forward (PyTorch training-mode BN semantics).
# ---------------------------------------------------------------------------
def down_sampling(x_nchw, w1, g1, b1, w2, g2, b2):
    """x: (N,Cin,H,W).  w1: (3,3,Cin,Cmid) HWIO, w2: (3,3,Cmid,Cout) HWIO
    (PyTorch OIHW weights map via w.permute(2,3,1,0)).  Returns (N,Cout,H//2,W//2)."""
    x = x_nchw.astype(jnp.float32)
    n, cin, h, w = x.shape
    # TODO(synk): odd H/W would need MaxPool2d floor handling; U-Net use-case has even sizes.
    assert h % 2 == 0 and w % 2 == 0, "MaxPool2d(2) path assumes even H, W"
    hp, wp = h // 2, w // 2
    wpad = wp + 2
    span = (hp - 1) * wpad + wp
    lpad = (hp + 2) * wpad
    lpp = _round_up(lpad, 128)               # lane-dense per-image segment
    tail = _round_up(2 * wpad + 2, 128)      # halo so every tap slice stays in range
    cmid, cout = w1.shape[-1], w2.shape[-1]
    bt = _pick_bt(n)
    nt = n // bt
    count = n * hp * wp

    w1m = w1.reshape(9 * cin, cmid).T.astype(jnp.float32)      # (Cmid, 9*Cin)
    w2m = w2.reshape(9 * cmid, cout).T.astype(jnp.float32)     # (Cout, 9*Cmid)
    se, so, te, to = _pool_selectors(w, wp)
    mask = _span_mask(hp, wp, lpp)

    x2 = x.reshape(n, cin * hp, 2 * w)       # free contiguous reshape, no HBM transpose

    cparams = pltpu.CompilerParams(
        dimension_semantics=("parallel",),   # no cross-step state -> megacore safe
        vmem_limit_bytes=_vmem_limit_bytes(),
    )

    # ---- phase A: maxpool + conv1 (+ per-image BN1 partial sums in slack lanes) ----
    flops_a = n * (32 * cin * hp * wp * wpad + 2 * cmid * 9 * cin * lpp)
    bytes_a = 4 * (x2.size + n * cmid * lpp + 4 * se.size + w1m.size + mask.size)
    y1 = pl.pallas_call(
        functools.partial(_pool_conv1_kernel, bt=bt, cin=cin, hp=hp, wp=wp,
                          lpp=lpp, tail=tail),
        grid=(nt,),
        in_specs=[
            pl.BlockSpec((bt, cin * hp, 2 * w), lambda t: (t, 0, 0)),
            _rep_spec(se), _rep_spec(so), _rep_spec(te), _rep_spec(to),
            _rep_spec(w1m), _rep_spec(mask),
        ],
        out_specs=pl.BlockSpec((bt, cmid, lpp), lambda t: (t, 0, 0)),
        out_shape=jax.ShapeDtypeStruct((n, cmid, lpp), jnp.float32),
        compiler_params=cparams,
        cost_estimate=pl.CostEstimate(flops=flops_a, transcendentals=0,
                                      bytes_accessed=bytes_a),
    )(x2, se, so, te, to, w1m, mask)

    scale1, bias1 = _fold_bn(y1[:, :, span:span + 2],
                             g1.reshape(-1).astype(jnp.float32),
                             b1.reshape(-1).astype(jnp.float32), count)

    # ---- phase B: fused BN1+ReLU + conv2 (+ per-image BN2 partial sums) ----
    flops_b = n * (2 * cout * 9 * cmid * lpp + 6 * cmid * lpp)
    bytes_b = 4 * (n * cmid * lpp + n * cout * lpp + w2m.size + mask.size + 2 * cmid)
    y2 = pl.pallas_call(
        functools.partial(_bn_conv2_kernel, bt=bt, cmid=cmid, hp=hp, wp=wp,
                          lpp=lpp, tail=tail),
        grid=(nt,),
        in_specs=[
            pl.BlockSpec((bt, cmid, lpp), lambda t: (t, 0, 0)),
            _rep_spec(scale1), _rep_spec(bias1), _rep_spec(w2m), _rep_spec(mask),
        ],
        out_specs=pl.BlockSpec((bt, cout, lpp), lambda t: (t, 0, 0)),
        out_shape=jax.ShapeDtypeStruct((n, cout, lpp), jnp.float32),
        compiler_params=cparams,
        cost_estimate=pl.CostEstimate(flops=flops_b, transcendentals=0,
                                      bytes_accessed=bytes_b),
    )(y1, scale1, bias1, w2m, mask)

    scale2, bias2 = _fold_bn(y2[:, :, span:span + 2],
                             g2.reshape(-1).astype(jnp.float32),
                             b2.reshape(-1).astype(jnp.float32), count)

    # ---- phase C: fused BN2+ReLU + de-pad to the NCHW output ----
    flops_c = n * 3 * cout * lpp
    bytes_c = 4 * (n * cout * lpp + n * cout * hp * wp + 2 * cout)
    out_flat = pl.pallas_call(
        functools.partial(_bn_relu_depad_kernel, bt=bt, hp=hp, wp=wp),
        grid=(nt,),
        in_specs=[
            pl.BlockSpec((bt, cout, lpp), lambda t: (t, 0, 0)),
            _rep_spec(scale2), _rep_spec(bias2),
        ],
        out_specs=pl.BlockSpec((bt, cout, hp * wp), lambda t: (t, 0, 0)),
        out_shape=jax.ShapeDtypeStruct((n, cout, hp * wp), jnp.float32),
        compiler_params=cparams,
        cost_estimate=pl.CostEstimate(flops=flops_c, transcendentals=0,
                                      bytes_accessed=bytes_c),
    )(y2, scale2, bias2)

    return out_flat.reshape(n, cout, hp, wp)      # free contiguous reshape


# ---------------------------------------------------------------------------
# Pure-JAX reference (PyTorch train-mode forward), NCHW throughout.
# ---------------------------------------------------------------------------
def _reference(x, w1, g1, b1, w2, g2, b2):
    p = jax.lax.reduce_window(x, -jnp.inf, jax.lax.max,
                              (1, 1, 2, 2), (1, 1, 2, 2), "VALID")

    def conv_bn_relu(inp, wt, g, b):
        y = jax.lax.conv_general_dilated(
            inp, wt, (1, 1), "SAME",
            dimension_numbers=("NCHW", "HWIO", "NCHW"))
        mean = jnp.mean(y, axis=(0, 2, 3), keepdims=True)
        var = jnp.mean((y - mean) ** 2, axis=(0, 2, 3), keepdims=True)
        yh = (y - mean) * jax.lax.rsqrt(var + BN_EPS)
        return jnp.maximum(yh * g.reshape(1, -1, 1, 1) + b.reshape(1, -1, 1, 1), 0.0)

    return conv_bn_relu(conv_bn_relu(p, w1, g1, b1), w2, g2, b2)


if __name__ == "__main__":
    # Shapes consistent with Down_sampling(in_channels=4, out_channels=8)
    N, Cin, H, W = 2, 4, 16, 16
    Cmid = Cout = 8

    key = jax.random.PRNGKey(0)
    kx, k1, k2, kg1, kb1, kg2, kb2 = jax.random.split(key, 7)
    x = jax.random.normal(kx, (N, Cin, H, W), jnp.float32)
    w1 = jax.random.normal(k1, (3, 3, Cin, Cmid), jnp.float32) * 0.1   # HWIO
    w2 = jax.random.normal(k2, (3, 3, Cmid, Cout), jnp.float32) * 0.1  # HWIO
    g1 = 1.0 + 0.1 * jax.random.normal(kg1, (Cmid,), jnp.float32)
    b1 = 0.1 * jax.random.normal(kb1, (Cmid,), jnp.float32)
    g2 = 1.0 + 0.1 * jax.random.normal(kg2, (Cout,), jnp.float32)
    b2 = 0.1 * jax.random.normal(kb2, (Cout,), jnp.float32)

    fn = jax.jit(down_sampling)
    out = jax.block_until_ready(fn(x, w1, g1, b1, w2, g2, b2))

    ref = _reference(x, w1, g1, b1, w2, g2, b2)
    assert out.shape == (N, Cout, H // 2, W // 2), out.shape
    err = float(jnp.max(jnp.abs(out - ref)))
    assert jnp.allclose(out, ref, atol=2e-3, rtol=2e-3), err

    print("KERNEL_OK")
</pallas_src>

<mosaic_0001>
module attributes {stable_mosaic.version = 11 : i64} {
  func.func @_bn_conv2_kernel(%arg0: i32, %arg1: memref<1x8x128xf32, #tpu.memory_space<vmem>>, %arg2: memref<8x1xf32, #tpu.memory_space<vmem>>, %arg3: memref<8x1xf32, #tpu.memory_space<vmem>>, %arg4: memref<8x72xf32, #tpu.memory_space<vmem>>, %arg5: memref<1x128xf32, #tpu.memory_space<vmem>>, %arg6: memref<1x8x128xf32, #tpu.memory_space<vmem>>) attributes {dimension_semantics = [#tpu.dimension_semantics<parallel>], iteration_bounds = array<i64: 2>, scalar_prefetch = 0 : i64, scratch_operands = 0 : i64, tpu.core_type = #tpu.core_type<tc>, window_params = [{transform_indices = @transform_0, window_bounds = array<i64: 1, 8, 128>}, {pipeline_mode = #tpu.pipeline_mode<synchronous>, transform_indices = @transform_1, window_bounds = array<i64: 8, 1>}, {pipeline_mode = #tpu.pipeline_mode<synchronous>, transform_indices = @transform_2, window_bounds = array<i64: 8, 1>}, {pipeline_mode = #tpu.pipeline_mode<synchronous>, transform_indices = @transform_3, window_bounds = array<i64: 8, 72>}, {pipeline_mode = #tpu.pipeline_mode<synchronous>, transform_indices = @transform_4, window_bounds = array<i64: 1, 128>}, {transform_indices = @transform_5, window_bounds = array<i64: 1, 8, 128>}]} {
    %c0 = arith.constant 0 : index
    %c0_0 = arith.constant 0 : index
    %0 = vector.load %arg2[%c0, %c0_0] : memref<8x1xf32, #tpu.memory_space<vmem>>, vector<8x1xf32>
    %c0_1 = arith.constant 0 : index
    %c0_2 = arith.constant 0 : index
    %1 = vector.load %arg3[%c0_1, %c0_2] : memref<8x1xf32, #tpu.memory_space<vmem>>, vector<8x1xf32>
    %c0_3 = arith.constant 0 : index
    %c0_4 = arith.constant 0 : index
    %2 = vector.load %arg5[%c0_3, %c0_4] : memref<1x128xf32, #tpu.memory_space<vmem>>, vector<1x128xf32>
    %cst = arith.constant 0.000000e+00 : f32
    %3 = vector.broadcast %cst : f32 to vector<8x11xf32>
    %cst_5 = arith.constant 0.000000e+00 : f32
    %4 = vector.broadcast %cst_5 : f32 to vector<8x39xf32>
    %c0_6 = arith.constant 0 : index
    %c0_7 = arith.constant 0 : index
    %c0_8 = arith.constant 0 : index
    %5 = vector.load %arg1[%c0_6, %c0_7, %c0_8] : memref<1x8x128xf32, #tpu.memory_space<vmem>>, vector<1x8x128xf32>
    %6 = vector.shape_cast %5 : vector<1x8x128xf32> to vector<8x128xf32>
    %7 = vector.broadcast %0 : vector<8x1xf32> to vector<8x128xf32>
    %8 = arith.mulf %6, %7 : vector<8x128xf32>
    %9 = vector.broadcast %1 : vector<8x1xf32> to vector<8x128xf32>
    %10 = arith.addf %8, %9 : vector<8x128xf32>
    %cst_9 = arith.constant 0.000000e+00 : f32
    %11 = vector.broadcast %cst_9 : f32 to vector<8x128xf32>
    %12 = arith.maximumf %10, %11 : vector<8x128xf32>
    %13 = vector.broadcast %2 : vector<1x128xf32> to vector<8x128xf32>
    %14 = arith.mulf %12, %13 : vector<8x128xf32>
    %15 = vector.extract_strided_slice %14 {offsets = [0, 0], sizes = [8, 78], strides = [1, 1]} : vector<8x128xf32> to vector<8x78xf32>
    %cst_10 = arith.constant 0.000000e+00 : f32
    %16 = vector.broadcast %cst_10 : f32 to vector<8x128xf32>
    %17 = tpu.concatenate %3, %15, %4, %16 in 1 : vector<8x11xf32>, vector<8x78xf32>, vector<8x39xf32>, vector<8x128xf32> -> vector<8x256xf32>
    %18 = vector.extract_strided_slice %17 {offsets = [0, 0], sizes = [8, 128], strides = [1, 1]} : vector<8x256xf32> to vector<8x128xf32>
    %19 = vector.extract_strided_slice %17 {offsets = [0, 1], sizes = [8, 128], strides = [1, 1]} : vector<8x256xf32> to vector<8x128xf32>
    %20 = vector.extract_strided_slice %17 {offsets = [0, 2], sizes = [8, 128], strides = [1, 1]} : vector<8x256xf32> to vector<8x128xf32>
    %21 = vector.extract_strided_slice %17 {offsets = [0, 10], sizes = [8, 128], strides = [1, 1]} : vector<8x256xf32> to vector<8x128xf32>
    %22 = vector.extract_strided_slice %17 {offsets = [0, 11], sizes = [8, 128], strides = [1, 1]} : vector<8x256xf32> to vector<8x128xf32>
    %23 = vector.extract_strided_slice %17 {offsets = [0, 12], sizes = [8, 128], strides = [1, 1]} : vector<8x256xf32> to vector<8x128xf32>
    %24 = vector.extract_strided_slice %17 {offsets = [0, 20], sizes = [8, 128], strides = [1, 1]} : vector<8x256xf32> to vector<8x128xf32>
    %25 = vector.extract_strided_slice %17 {offsets = [0, 21], sizes = [8, 128], strides = [1, 1]} : vector<8x256xf32> to vector<8x128xf32>
    %26 = vector.extract_strided_slice %17 {offsets = [0, 22], sizes = [8, 128], strides = [1, 1]} : vector<8x256xf32> to vector<8x128xf32>
    %27 = tpu.concatenate %18, %19, %20, %21, %22, %23, %24, %25, %26 in 0 : vector<8x128xf32>, vector<8x128xf32>, vector<8x128xf32>, vector<8x128xf32>, vector<8x128xf32>, vector<8x128xf32>, vector<8x128xf32>, vector<8x128xf32>, vector<8x128xf32> -> vector<72x128xf32>
    %c0_11 = arith.constant 0 : index
    %c0_12 = arith.constant 0 : index
    %28 = vector.load %arg4[%c0_11, %c0_12] : memref<8x72xf32, #tpu.memory_space<vmem>>, vector<8x72xf32>
    %cst_13 = arith.constant dense<0.000000e+00> : vector<8x128xf32>
    %29 = tpu.matmul %28, %27, %cst_13 {dimension_numbers = #tpu.dot_dimension_numbers<[1], [0], [0], [1], [0, 0, 1, 1], [], []>} : vector<8x72xf32>, vector<72x128xf32>, vector<8x128xf32> -> vector<8x128xf32>
    %30 = vector.broadcast %2 : vector<1x128xf32> to vector<8x128xf32>
    %31 = arith.mulf %29, %30 : vector<8x128xf32>
    %c0_14 = arith.constant 0 : index
    %c0_15 = arith.constant 0 : index
    %c0_16 = arith.constant 0 : index
    %32 = vector.load %arg6[%c0_14, %c0_15, %c0_16] : memref<1x8x128xf32, #tpu.memory_space<vmem>>, vector<1x8x128xf32>
    %33 = vector.shape_cast %32 : vector<1x8x128xf32> to vector<8x128xf32>
    %34 = vector.shape_cast %31 : vector<8x128xf32> to vector<1x8x128xf32>
    tpu.vector_store %arg6[%c0_14, %c0_15, %c0_16], %34 {strides = array<i32>} : memref<1x8x128xf32, #tpu.memory_space<vmem>>, vector<1x8x128xf32>,
    %35 = vector.extract_strided_slice %31 {offsets = [0, 0], sizes = [8, 78], strides = [1, 1]} : vector<8x128xf32> to vector<8x78xf32>
    %cst_17 = arith.constant dense<0.000000e+00> : vector<8xf32>
    %36 = vector.multi_reduction <add>, %35, %cst_17 [1] : vector<8x78xf32> to vector<8xf32>
    %37 = vector.shape_cast %36 : vector<8xf32> to vector<8x1xf32>
    %38 = arith.mulf %35, %35 : vector<8x78xf32>
    %cst_18 = arith.constant dense<0.000000e+00> : vector<8xf32>
    %39 = vector.multi_reduction <add>, %38, %cst_18 [1] : vector<8x78xf32> to vector<8xf32>
    %40 = vector.shape_cast %39 : vector<8xf32> to vector<8x1xf32>
    %41 = tpu.concatenate %37, %40 in 1 : vector<8x1xf32>, vector<8x1xf32> -> vector<8x2xf32>
    %c0_19 = arith.constant 0 : index
    %c0_20 = arith.constant 0 : index
    %c78 = arith.constant 78 : index
    %42 = vector.load %arg6[%c0_19, %c0_20, %c78] : memref<1x8x128xf32, #tpu.memory_space<vmem>>, vector<1x8x2xf32>
    %43 = vector.shape_cast %42 : vector<1x8x2xf32> to vector<8x2xf32>
    %44 = vector.shape_cast %41 : vector<8x2xf32> to vector<1x8x2xf32>
    tpu.vector_store %arg6[%c0_19, %c0_20, %c78], %44 {strides = array<i32>} : memref<1x8x128xf32, #tpu.memory_space<vmem>>, vector<1x8x2xf32>,
    return
  }
  func.func @transform_0(%arg0: i32) -> (i32, i32, i32) {
    %c0_i32 = arith.constant 0 : i32
    %c0_i32_0 = arith.constant 0 : i32
    %c0_i32_1 = arith.constant 0 : i32
    return %arg0, %c0_i32, %c0_i32_0 : i32, i32, i32
  }
  func.func @transform_1(%arg0: i32) -> (i32, i32) {
    %c0_i32 = arith.constant 0 : i32
    %c0_i32_0 = arith.constant 0 : i32
    %c0_i32_1 = arith.constant 0 : i32
    return %c0_i32, %c0_i32_0 : i32, i32
  }
  func.func @transform_2(%arg0: i32) -> (i32, i32) {
    %c0_i32 = arith.constant 0 : i32
    %c0_i32_0 = arith.constant 0 : i32
    %c0_i32_1 = arith.constant 0 : i32
    return %c0_i32, %c0_i32_0 : i32, i32
  }
  func.func @transform_3(%arg0: i32) -> (i32, i32) {
    %c0_i32 = arith.constant 0 : i32
    %c0_i32_0 = arith.constant 0 : i32
    %c0_i32_1 = arith.constant 0 : i32
    return %c0_i32, %c0_i32_0 : i32, i32
  }
  func.func @transform_4(%arg0: i32) -> (i32, i32) {
    %c0_i32 = arith.constant 0 : i32
    %c0_i32_0 = arith.constant 0 : i32
    %c0_i32_1 = arith.constant 0 : i32
    return %c0_i32, %c0_i32_0 : i32, i32
  }
  func.func @transform_5(%arg0: i32) -> (i32, i32, i32) {
    %c0_i32 = arith.constant 0 : i32
    %c0_i32_0 = arith.constant 0 : i32
    %c0_i32_1 = arith.constant 0 : i32
    return %arg0, %c0_i32, %c0_i32_0 : i32, i32, i32
  }
}

module attributes {stable_mosaic.version = 11 : i64} {
  func.func @_pool_conv1_kernel(%arg0: i32, %arg1: memref<1x32x32xf32, #tpu.memory_space<vmem>>, %arg2: memref<32x10xf32, #tpu.memory_space<vmem>>, %arg3: memref<32x10xf32, #tpu.memory_space<vmem>>, %arg4: memref<32x10xf32, #tpu.memory_space<vmem>>, %arg5: memref<32x10xf32, #tpu.memory_space<vmem>>, %arg6: memref<8x36xf32, #tpu.memory_space<vmem>>, %arg7: memref<1x128xf32, #tpu.memory_space<vmem>>, %arg8: memref<1x8x128xf32, #tpu.memory_space<vmem>>) attributes {dimension_semantics = [#tpu.dimension_semantics<parallel>], iteration_bounds = array<i64: 2>, scalar_prefetch = 0 : i64, scratch_operands = 0 : i64, tpu.core_type = #tpu.core_type<tc>, window_params = [{transform_indices = @transform_0, window_bounds = array<i64: 1, 32, 32>}, {pipeline_mode = #tpu.pipeline_mode<synchronous>, transform_indices = @transform_1, window_bounds = array<i64: 32, 10>}, {pipeline_mode = #tpu.pipeline_mode<synchronous>, transform_indices = @transform_2, window_bounds = array<i64: 32, 10>}, {pipeline_mode = #tpu.pipeline_mode<synchronous>, transform_indices = @transform_3, window_bounds = array<i64: 32, 10>}, {pipeline_mode = #tpu.pipeline_mode<synchronous>, transform_indices = @transform_4, window_bounds = array<i64: 32, 10>}, {pipeline_mode = #tpu.pipeline_mode<synchronous>, transform_indices = @transform_5, window_bounds = array<i64: 8, 36>}, {pipeline_mode = #tpu.pipeline_mode<synchronous>, transform_indices = @transform_6, window_bounds = array<i64: 1, 128>}, {transform_indices = @transform_7, window_bounds = array<i64: 1, 8, 128>}]} {
    %c0 = arith.constant 0 : index
    %c0_0 = arith.constant 0 : index
    %c0_1 = arith.constant 0 : index
    %0 = vector.load %arg1[%c0, %c0_0, %c0_1] : memref<1x32x32xf32, #tpu.memory_space<vmem>>, vector<1x32x32xf32>
    %1 = vector.shape_cast %0 : vector<1x32x32xf32> to vector<32x32xf32>
    %c0_2 = arith.constant 0 : index
    %c0_3 = arith.constant 0 : index
    %2 = vector.load %arg2[%c0_2, %c0_3] : memref<32x10xf32, #tpu.memory_space<vmem>>, vector<32x10xf32>
    %cst = arith.constant dense<0.000000e+00> : vector<32x10xf32>
    %3 = tpu.matmul %1, %2, %cst {dimension_numbers = #tpu.dot_dimension_numbers<[1], [0], [0], [1], [0, 0, 1, 1], [], []>} : vector<32x32xf32>, vector<32x10xf32>, vector<32x10xf32> -> vector<32x10xf32>
    %c0_4 = arith.constant 0 : index
    %c0_5 = arith.constant 0 : index
    %4 = vector.load %arg3[%c0_4, %c0_5] : memref<32x10xf32, #tpu.memory_space<vmem>>, vector<32x10xf32>
    %cst_6 = arith.constant dense<0.000000e+00> : vector<32x10xf32>
    %5 = tpu.matmul %1, %4, %cst_6 {dimension_numbers = #tpu.dot_dimension_numbers<[1], [0], [0], [1], [0, 0, 1, 1], [], []>} : vector<32x32xf32>, vector<32x10xf32>, vector<32x10xf32> -> vector<32x10xf32>
    %6 = arith.maximumf %3, %5 : vector<32x10xf32>
    %c0_7 = arith.constant 0 : index
    %c0_8 = arith.constant 0 : index
    %7 = vector.load %arg4[%c0_7, %c0_8] : memref<32x10xf32, #tpu.memory_space<vmem>>, vector<32x10xf32>
    %cst_9 = arith.constant dense<0.000000e+00> : vector<32x10xf32>
    %8 = tpu.matmul %1, %7, %cst_9 {dimension_numbers = #tpu.dot_dimension_numbers<[1], [0], [0], [1], [0, 0, 1, 1], [], []>} : vector<32x32xf32>, vector<32x10xf32>, vector<32x10xf32> -> vector<32x10xf32>
    %c0_10 = arith.constant 0 : index
    %c0_11 = arith.constant 0 : index
    %9 = vector.load %arg5[%c0_10, %c0_11] : memref<32x10xf32, #tpu.memory_space<vmem>>, vector<32x10xf32>
    %cst_12 = arith.constant dense<0.000000e+00> : vector<32x10xf32>
    %10 = tpu.matmul %1, %9, %cst_12 {dimension_numbers = #tpu.dot_dimension_numbers<[1], [0], [0], [1], [0, 0, 1, 1], [], []>} : vector<32x32xf32>, vector<32x10xf32>, vector<32x10xf32> -> vector<32x10xf32>
    %11 = arith.maximumf %8, %10 : vector<32x10xf32>
    %12 = arith.maximumf %6, %11 : vector<32x10xf32>
    %13 = vector.shape_cast %12 : vector<32x10xf32> to vector<1x4x8x10xf32>
    %cst_13 = arith.constant 0.000000e+00 : f32
    %14 = vector.broadcast %cst_13 : f32 to vector<4x10xf32>
    %cst_14 = arith.constant 0.000000e+00 : f32
    %15 = vector.broadcast %cst_14 : f32 to vector<4x38xf32>
    %16 = vector.extract_strided_slice %13 {offsets = [0, 0, 0, 0], sizes = [1, 4, 1, 10], strides = [1, 1, 1, 1]} : vector<1x4x8x10xf32> to vector<1x4x1x10xf32>
    %17 = vector.shape_cast %16 : vector<1x4x1x10xf32> to vector<4x10xf32>
    %18 = vector.extract_strided_slice %13 {offsets = [0, 0, 1, 0], sizes = [1, 4, 1, 10], strides = [1, 1, 1, 1]} : vector<1x4x8x10xf32> to vector<1x4x1x10xf32>
    %19 = vector.shape_cast %18 : vector<1x4x1x10xf32> to vector<4x10xf32>
    %20 = vector.extract_strided_slice %13 {offsets = [0, 0, 2, 0], sizes = [1, 4, 1, 10], strides = [1, 1, 1, 1]} : vector<1x4x8x10xf32> to vector<1x4x1x10xf32>
    %21 = vector.shape_cast %20 : vector<1x4x1x10xf32> to vector<4x10xf32>
    %22 = vector.extract_strided_slice %13 {offsets = [0, 0, 3, 0], sizes = [1, 4, 1, 10], strides = [1, 1, 1, 1]} : vector<1x4x8x10xf32> to vector<1x4x1x10xf32>
    %23 = vector.shape_cast %22 : vector<1x4x1x10xf32> to vector<4x10xf32>
    %24 = vector.extract_strided_slice %13 {offsets = [0, 0, 4, 0], sizes = [1, 4, 1, 10], strides = [1, 1, 1, 1]} : vector<1x4x8x10xf32> to vector<1x4x1x10xf32>
    %25 = vector.shape_cast %24 : vector<1x4x1x10xf32> to vector<4x10xf32>
    %26 = vector.extract_strided_slice %13 {offsets = [0, 0, 5, 0], sizes = [1, 4, 1, 10], strides = [1, 1, 1, 1]} : vector<1x4x8x10xf32> to vector<1x4x1x10xf32>
    %27 = vector.shape_cast %26 : vector<1x4x1x10xf32> to vector<4x10xf32>
    %28 = vector.extract_strided_slice %13 {offsets = [0, 0, 6, 0], sizes = [1, 4, 1, 10], strides = [1, 1, 1, 1]} : vector<1x4x8x10xf32> to vector<1x4x1x10xf32>
    %29 = vector.shape_cast %28 : vector<1x4x1x10xf32> to vector<4x10xf32>
    %30 = vector.extract_strided_slice %13 {offsets = [0, 0, 7, 0], sizes = [1, 4, 1, 10], strides = [1, 1, 1, 1]} : vector<1x4x8x10xf32> to vector<1x4x1x10xf32>
    %31 = vector.shape_cast %30 : vector<1x4x1x10xf32> to vector<4x10xf32>
    %cst_15 = arith.constant 0.000000e+00 : f32
    %32 = vector.broadcast %cst_15 : f32 to vector<4x128xf32>
    %33 = tpu.concatenate %14, %17, %19, %21, %23, %25, %27, %29, %31, %15, %32 in 1 : vector<4x10xf32>, vector<4x10xf32>, vector<4x10xf32>, vector<4x10xf32>, vector<4x10xf32>, vector<4x10xf32>, vector<4x10xf32>, vector<4x10xf32>, vector<4x10xf32>, vector<4x38xf32>, vector<4x128xf32> -> vector<4x256xf32>
    %34 = vector.extract_strided_slice %33 {offsets = [0, 0], sizes = [4, 128], strides = [1, 1]} : vector<4x256xf32> to vector<4x128xf32>
    %35 = vector.extract_strided_slice %33 {offsets = [0, 1], sizes = [4, 128], strides = [1, 1]} : vector<4x256xf32> to vector<4x128xf32>
    %36 = vector.extract_strided_slice %33 {offsets = [0, 2], sizes = [4, 128], strides = [1, 1]} : vector<4x256xf32> to vector<4x128xf32>
    %37 = vector.extract_strided_slice %33 {offsets = [0, 10], sizes = [4, 128], strides = [1, 1]} : vector<4x256xf32> to vector<4x128xf32>
    %38 = vector.extract_strided_slice %33 {offsets = [0, 11], sizes = [4, 128], strides = [1, 1]} : vector<4x256xf32> to vector<4x128xf32>
    %39 = vector.extract_strided_slice %33 {offsets = [0, 12], sizes = [4, 128], strides = [1, 1]} : vector<4x256xf32> to vector<4x128xf32>
    %40 = vector.extract_strided_slice %33 {offsets = [0, 20], sizes = [4, 128], strides = [1, 1]} : vector<4x256xf32> to vector<4x128xf32>
    %41 = vector.extract_strided_slice %33 {offsets = [0, 21], sizes = [4, 128], strides = [1, 1]} : vector<4x256xf32> to vector<4x128xf32>
    %42 = vector.extract_strided_slice %33 {offsets = [0, 22], sizes = [4, 128], strides = [1, 1]} : vector<4x256xf32> to vector<4x128xf32>
    %43 = tpu.concatenate %34, %35, %36, %37, %38, %39, %40, %41, %42 in 0 : vector<4x128xf32>, vector<4x128xf32>, vector<4x128xf32>, vector<4x128xf32>, vector<4x128xf32>, vector<4x128xf32>, vector<4x128xf32>, vector<4x128xf32>, vector<4x128xf32> -> vector<36x128xf32>
    %c0_16 = arith.constant 0 : index
    %c0_17 = arith.constant 0 : index
    %44 = vector.load %arg6[%c0_16, %c0_17] : memref<8x36xf32, #tpu.memory_space<vmem>>, vector<8x36xf32>
    %cst_18 = arith.constant dense<0.000000e+00> : vector<8x128xf32>
    %45 = tpu.matmul %44, %43, %cst_18 {dimension_numbers = #tpu.dot_dimension_numbers<[1], [0], [0], [1], [0, 0, 1, 1], [], []>} : vector<8x36xf32>, vector<36x128xf32>, vector<8x128xf32> -> vector<8x128xf32>
    %c0_19 = arith.constant 0 : index
    %c0_20 = arith.constant 0 : index
    %46 = vector.load %arg7[%c0_19, %c0_20] : memref<1x128xf32, #tpu.memory_space<vmem>>, vector<1x128xf32>
    %47 = vector.broadcast %46 : vector<1x128xf32> to vector<8x128xf32>
    %48 = arith.mulf %45, %47 : vector<8x128xf32>
    %c0_21 = arith.constant 0 : index
    %c0_22 = arith.constant 0 : index
    %c0_23 = arith.constant 0 : index
    %49 = vector.load %arg8[%c0_21, %c0_22, %c0_23] : memref<1x8x128xf32, #tpu.memory_space<vmem>>, vector<1x8x128xf32>
    %50 = vector.shape_cast %49 : vector<1x8x128xf32> to vector<8x128xf32>
    %51 = vector.shape_cast %48 : vector<8x128xf32> to vector<1x8x128xf32>
    tpu.vector_store %arg8[%c0_21, %c0_22, %c0_23], %51 {strides = array<i32>} : memref<1x8x128xf32, #tpu.memory_space<vmem>>, vector<1x8x128xf32>,
    %52 = vector.extract_strided_slice %48 {offsets = [0, 0], sizes = [8, 78], strides = [1, 1]} : vector<8x128xf32> to vector<8x78xf32>
    %cst_24 = arith.constant dense<0.000000e+00> : vector<8xf32>
    %53 = vector.multi_reduction <add>, %52, %cst_24 [1] : vector<8x78xf32> to vector<8xf32>
    %54 = vector.shape_cast %53 : vector<8xf32> to vector<8x1xf32>
    %55 = arith.mulf %52, %52 : vector<8x78xf32>
    %cst_25 = arith.constant dense<0.000000e+00> : vector<8xf32>
    %56 = vector.multi_reduction <add>, %55, %cst_25 [1] : vector<8x78xf32> to vector<8xf32>
    %57 = vector.shape_cast %56 : vector<8xf32> to vector<8x1xf32>
    %58 = tpu.concatenate %54, %57 in 1 : vector<8x1xf32>, vector<8x1xf32> -> vector<8x2xf32>
    %c0_26 = arith.constant 0 : index
    %c0_27 = arith.constant 0 : index
    %c78 = arith.constant 78 : index
    %59 = vector.load %arg8[%c0_26, %c0_27, %c78] : memref<1x8x128xf32, #tpu.memory_space<vmem>>, vector<1x8x2xf32>
    %60 = vector.shape_cast %59 : vector<1x8x2xf32> to vector<8x2xf32>
    %61 = vector.shape_cast %58 : vector<8x2xf32> to vector<1x8x2xf32>
    tpu.vector_store %arg8[%c0_26, %c0_27, %c78], %61 {strides = array<i32>} : memref<1x8x128xf32, #tpu.memory_space<vmem>>, vector<1x8x2xf32>,
    return
  }
  func.func @transform_0(%arg0: i32) -> (i32, i32, i32) {
    %c0_i32 = arith.constant 0 : i32
    %c0_i32_0 = arith.constant 0 : i32
    %c0_i32_1 = arith.constant 0 : i32
    return %arg0, %c0_i32, %c0_i32_0 : i32, i32, i32
  }
  func.func @transform_1(%arg0: i32) -> (i32, i32) {
    %c0_i32 = arith.constant 0 : i32
    %c0_i32_0 = arith.constant 0 : i32
    %c0_i32_1 = arith.constant 0 : i32
    return %c0_i32, %c0_i32_0 : i32, i32
  }
  func.func @transform_2(%arg0: i32) -> (i32, i32) {
    %c0_i32 = arith.constant 0 : i32
    %c0_i32_0 = arith.constant 0 : i32
    %c0_i32_1 = arith.constant 0 : i32
    return %c0_i32, %c0_i32_0 : i32, i32
  }
  func.func @transform_3(%arg0: i32) -> (i32, i32) {
    %c0_i32 = arith.constant 0 : i32
    %c0_i32_0 = arith.constant 0 : i32
    %c0_i32_1 = arith.constant 0 : i32
    return %c0_i32, %c0_i32_0 : i32, i32
  }
  func.func @transform_4(%arg0: i32) -> (i32, i32) {
    %c0_i32 = arith.constant 0 : i32
    %c0_i32_0 = arith.constant 0 : i32
    %c0_i32_1 = arith.constant 0 : i32
    return %c0_i32, %c0_i32_0 : i32, i32
  }
  func.func @transform_5(%arg0: i32) -> (i32, i32) {
    %c0_i32 = arith.constant 0 : i32
    %c0_i32_0 = arith.constant 0 : i32
    %c0_i32_1 = arith.constant 0 : i32
    return %c0_i32, %c0_i32_0 : i32, i32
  }
  func.func @transform_6(%arg0: i32) -> (i32, i32) {
    %c0_i32 = arith.constant 0 : i32
    %c0_i32_0 = arith.constant 0 : i32
    %c0_i32_1 = arith.constant 0 : i32
    return %c0_i32, %c0_i32_0 : i32, i32
  }
  func.func @transform_7(%arg0: i32) -> (i32, i32, i32) {
    %c0_i32 = arith.constant 0 : i32
    %c0_i32_0 = arith.constant 0 : i32
    %c0_i32_1 = arith.constant 0 : i32
    return %arg0, %c0_i32, %c0_i32_0 : i32, i32, i32
  }
}

module attributes {stable_mosaic.version = 11 : i64} {
  func.func @_bn_relu_depad_kernel(%arg0: i32, %arg1: memref<1x8x128xf32, #tpu.memory_space<vmem>>, %arg2: memref<8x1xf32, #tpu.memory_space<vmem>>, %arg3: memref<8x1xf32, #tpu.memory_space<vmem>>, %arg4: memref<1x8x64xf32, #tpu.memory_space<vmem>>) attributes {dimension_semantics = [#tpu.dimension_semantics<parallel>], iteration_bounds = array<i64: 2>, scalar_prefetch = 0 : i64, scratch_operands = 0 : i64, tpu.core_type = #tpu.core_type<tc>, window_params = [{transform_indices = @transform_0, window_bounds = array<i64: 1, 8, 128>}, {pipeline_mode = #tpu.pipeline_mode<synchronous>, transform_indices = @transform_1, window_bounds = array<i64: 8, 1>}, {pipeline_mode = #tpu.pipeline_mode<synchronous>, transform_indices = @transform_2, window_bounds = array<i64: 8, 1>}, {transform_indices = @transform_3, window_bounds = array<i64: 1, 8, 64>}]} {
    %c0 = arith.constant 0 : index
    %c0_0 = arith.constant 0 : index
    %0 = vector.load %arg2[%c0, %c0_0] : memref<8x1xf32, #tpu.memory_space<vmem>>, vector<8x1xf32>
    %c0_1 = arith.constant 0 : index
    %c0_2 = arith.constant 0 : index
    %1 = vector.load %arg3[%c0_1, %c0_2] : memref<8x1xf32, #tpu.memory_space<vmem>>, vector<8x1xf32>
    %c0_3 = arith.constant 0 : index
    %c0_4 = arith.constant 0 : index
    %c0_5 = arith.constant 0 : index
    %2 = vector.load %arg1[%c0_3, %c0_4, %c0_5] : memref<1x8x128xf32, #tpu.memory_space<vmem>>, vector<1x8x128xf32>
    %3 = vector.shape_cast %2 : vector<1x8x128xf32> to vector<8x128xf32>
    %4 = vector.broadcast %0 : vector<8x1xf32> to vector<8x128xf32>
    %5 = arith.mulf %3, %4 : vector<8x128xf32>
    %6 = vector.broadcast %1 : vector<8x1xf32> to vector<8x128xf32>
    %7 = arith.addf %5, %6 : vector<8x128xf32>
    %cst = arith.constant 0.000000e+00 : f32
    %8 = vector.broadcast %cst : f32 to vector<8x128xf32>
    %9 = arith.maximumf %7, %8 : vector<8x128xf32>
    %10 = vector.extract_strided_slice %9 {offsets = [0, 0], sizes = [8, 8], strides = [1, 1]} : vector<8x128xf32> to vector<8x8xf32>
    %11 = vector.extract_strided_slice %9 {offsets = [0, 10], sizes = [8, 8], strides = [1, 1]} : vector<8x128xf32> to vector<8x8xf32>
    %12 = vector.extract_strided_slice %9 {offsets = [0, 20], sizes = [8, 8], strides = [1, 1]} : vector<8x128xf32> to vector<8x8xf32>
    %13 = vector.extract_strided_slice %9 {offsets = [0, 30], sizes = [8, 8], strides = [1, 1]} : vector<8x128xf32> to vector<8x8xf32>
    %14 = vector.extract_strided_slice %9 {offsets = [0, 40], sizes = [8, 8], strides = [1, 1]} : vector<8x128xf32> to vector<8x8xf32>
    %15 = vector.extract_strided_slice %9 {offsets = [0, 50], sizes = [8, 8], strides = [1, 1]} : vector<8x128xf32> to vector<8x8xf32>
    %16 = vector.extract_strided_slice %9 {offsets = [0, 60], sizes = [8, 8], strides = [1, 1]} : vector<8x128xf32> to vector<8x8xf32>
    %17 = vector.extract_strided_slice %9 {offsets = [0, 70], sizes = [8, 8], strides = [1, 1]} : vector<8x128xf32> to vector<8x8xf32>
    %18 = tpu.concatenate %10, %11, %12, %13, %14, %15, %16, %17 in 1 : vector<8x8xf32>, vector<8x8xf32>, vector<8x8xf32>, vector<8x8xf32>, vector<8x8xf32>, vector<8x8xf32>, vector<8x8xf32>, vector<8x8xf32> -> vector<8x64xf32>
    %c0_6 = arith.constant 0 : index
    %c0_7 = arith.constant 0 : index
    %c0_8 = arith.constant 0 : index
    %19 = vector.load %arg4[%c0_6, %c0_7, %c0_8] : memref<1x8x64xf32, #tpu.memory_space<vmem>>, vector<1x8x64xf32>
    %20 = vector.shape_cast %19 : vector<1x8x64xf32> to vector<8x64xf32>
    %21 = vector.shape_cast %18 : vector<8x64xf32> to vector<1x8x64xf32>
    tpu.vector_store %arg4[%c0_6, %c0_7, %c0_8], %21 {strides = array<i32>} : memref<1x8x64xf32, #tpu.memory_space<vmem>>, vector<1x8x64xf32>,
    return
  }
  func.func @transform_0(%arg0: i32) -> (i32, i32, i32) {
    %c0_i32 = arith.constant 0 : i32
    %c0_i32_0 = arith.constant 0 : i32
    %c0_i32_1 = arith.constant 0 : i32
    return %arg0, %c0_i32, %c0_i32_0 : i32, i32, i32
  }
  func.func @transform_1(%arg0: i32) -> (i32, i32) {
    %c0_i32 = arith.constant 0 : i32
    %c0_i32_0 = arith.constant 0 : i32
    %c0_i32_1 = arith.constant 0 : i32
    return %c0_i32, %c0_i32_0 : i32, i32
  }
  func.func @transform_2(%arg0: i32) -> (i32, i32) {
    %c0_i32 = arith.constant 0 : i32
    %c0_i32_0 = arith.constant 0 : i32
    %c0_i32_1 = arith.constant 0 : i32
    return %c0_i32, %c0_i32_0 : i32, i32
  }
  func.func @transform_3(%arg0: i32) -> (i32, i32, i32) {
    %c0_i32 = arith.constant 0 : i32
    %c0_i32_0 = arith.constant 0 : i32
    %c0_i32_1 = arith.constant 0 : i32
    return %arg0, %c0_i32, %c0_i32_0 : i32, i32, i32
  }
}

</mosaic_0001>

<llo_original>
// kernel: down_sampling.5
$region0: #{down_sampling.5}
  #allocation0 [shape = 'u32[]', space=smem, size = 0x4, offset = 0x4, fixed_abs, tag = 'smem constant byte address 0x4 - core index']
  #allocation1 [shape = 'u32[144,128]{1,0:T(1,128)}', space=vmem, size = 0x12000, scoped, tag = 'internal scratch']
  %s0 = inlined_call_operand.vmem [shape: f32[2,8,128], index: 0, kind: input, shape index: {}]
  %s1 = inlined_call_operand.vmem [shape: f32[8,1], index: 1, kind: input, shape index: {}]
  %s2 = inlined_call_operand.vmem [shape: f32[8,1], index: 2, kind: input, shape index: {}]
  %s3 = inlined_call_operand.vmem [shape: f32[2,8,64], index: 3, kind: output, shape index: {}]
  %s4 = sld [smem:[#allocation0]]
  $region45: #{down_sampling.5} parent=0
    _
  %s6 = ssub.s32 1, %s4
  %s7 = scalar_select 0, %s6, %s4
  loop: start=0, step=1, limit=4
  $region2: #{down_sampling.5} parent=0 // loop_pre_header
    _
  $region3: #{down_sampling.5} parent=0 // loop_header
    %s9 = sphi 0, %s13
    %p10 = scmp.ge.s32.totalorder %s9, 4
    %s19 = sphi 0, %s21
    %s22 = sphi 0, %s19
    %s23 = sphi 0, %s22
    %s39 = sphi 0, %s23
    %s43 = sphi 0, %s43
    %s45 = sphi 0, %s43
    %s46 = sphi 0, %s45
    %s60 = sphi 0, %s46
    %s64 = sphi 0, %s64
    %s66 = sphi 0, %s64
    %s67 = sphi 0, %s66
    %s81 = sphi 0, %s67
    %s87 = sphi 0, %s89
    %s90 = sphi 0, %s87
    %s91 = sphi 0, %s90
    %s107 = sphi 0, %s91
  $region4: #{down_sampling.5} parent=0 // loop_header_branch
    %12 = sbr.rel (%p10) target = $region8
  $region5: #{down_sampling.5} parent=0 // loop_body
    %s14 = ssub.s32 %s9, 1
    %s15 = ssub.s32 %s9, 2
    %s16 = sadd.s32 %s9, 1
    %s17 = ssub.s32 %s9, %s16
    %p18 = scmp.eq.s32.totalorder %s17, 0
    %s20 = sadd.s32 %s19, 1
    %s21 = scalar_select %p18, %s19, %s20
    %p24 = pneg %p18
    %p25 = scmp.eq.s32.totalorder %s9, 1
    %p26 = por %p24, %p25
    %p27 = scmp.ne.s32.totalorder %s19, %s22
    %p28 = scmp.eq.s32.totalorder %s9, 0
    %p29 = por %p27, %p28
    %p30 = scmp.ne.s32.totalorder %s19, %s22
    %p31 = scmp.eq.s32.totalorder %s14, 1
    %p32 = por %p30, %p31
    %p33 = scmp.ne.s32.totalorder %s22, %s23
    %p34 = scmp.eq.s32.totalorder %s14, 0
    %p35 = por %p33, %p34
    %p36 = scmp.ne.s32.totalorder %s22, %s23
    %p37 = scmp.eq.s32.totalorder %s15, 1
    %p38 = por %p36, %p37
    %p40 = scmp.ne.s32.totalorder %s23, %s39
    %p41 = scmp.eq.s32.totalorder %s15, 0
    %p42 = por %p40, %p41
    %s44 = sadd.s32 %s43, 1
    %p47 = scmp.eq.s32.totalorder %s9, 1
    %p48 = scmp.ne.s32.totalorder %s43, %s45
    %p49 = scmp.eq.s32.totalorder %s9, 0
    %p50 = por %p48, %p49
    %p51 = scmp.ne.s32.totalorder %s43, %s45
    %p52 = scmp.eq.s32.totalorder %s14, 1
    %p53 = por %p51, %p52
    %p54 = scmp.ne.s32.totalorder %s45, %s46
    %p55 = scmp.eq.s32.totalorder %s14, 0
    %p56 = por %p54, %p55
    %p57 = scmp.ne.s32.totalorder %s45, %s46
    %p58 = scmp.eq.s32.totalorder %s15, 1
    %p59 = por %p57, %p58
    %p61 = scmp.ne.s32.totalorder %s46, %s60
    %p62 = scmp.eq.s32.totalorder %s15, 0
    %p63 = por %p61, %p62
    %s65 = sadd.s32 %s64, 1
    %p68 = scmp.eq.s32.totalorder %s9, 1
    %p69 = scmp.ne.s32.totalorder %s64, %s66
    %p70 = scmp.eq.s32.totalorder %s9, 0
    %p71 = por %p69, %p70
    %p72 = scmp.ne.s32.totalorder %s64, %s66
    %p73 = scmp.eq.s32.totalorder %s14, 1
    %p74 = por %p72, %p73
    %p75 = scmp.ne.s32.totalorder %s66, %s67
    %p76 = scmp.eq.s32.totalorder %s14, 0
    %p77 = por %p75, %p76
    %p78 = scmp.ne.s32.totalorder %s66, %s67
    %p79 = scmp.eq.s32.totalorder %s15, 1
    %p80 = por %p78, %p79
    %p82 = scmp.ne.s32.totalorder %s67, %s81
    %p83 = scmp.eq.s32.totalorder %s15, 0
    %p84 = por %p82, %p83
    %s85 = ssub.s32 %s9, %s16
    %p86 = scmp.eq.s32.totalorder %s85, 0
    %s88 = sadd.s32 %s87, 1
    %s89 = scalar_select %p86, %s87, %s88
    %p92 = pneg %p86
    %p93 = scmp.eq.s32.totalorder %s9, 1
    %p94 = por %p92, %p93
    %p95 = scmp.ne.s32.totalorder %s87, %s90
    %p96 = scmp.eq.s32.totalorder %s9, 0
    %p97 = por %p95, %p96
    %p98 = scmp.ne.s32.totalorder %s87, %s90
    %p99 = scmp.eq.s32.totalorder %s14, 1
    %p100 = por %p98, %p99
    %p101 = scmp.ne.s32.totalorder %s90, %s91
    %p102 = scmp.eq.s32.totalorder %s14, 0
    %p103 = por %p101, %p102
    %p104 = scmp.ne.s32.totalorder %s90, %s91
    %p105 = scmp.eq.s32.totalorder %s15, 1
    %p106 = por %p104, %p105
    %p108 = scmp.ne.s32.totalorder %s91, %s107
    %p109 = scmp.eq.s32.totalorder %s15, 0
    %p110 = por %p108, %p109
    %p111 = scmp.le.s32.totalorder 1, %s9
    %p112 = scmp.lt.s32.totalorder %s9, 3
    %p113 = pnand %p111, %p112
    %p114 = pneg %p113
    // Predicated region
    $region9: #{down_sampling.5} parent=5 // pred_check
      _
    $region10: #{down_sampling.5} parent=5 // pred_check_branch
      %116 = sbr.rel (%p113) target = $region12
    $region11: #{down_sampling.5} parent=5 // pred_region
      %s117 = ssub.s32 %s9, 1
      // Predicated region
      $region13: #{down_sampling.5} parent=11 // pred_check
        %p118 = pneg %p56
      $region14: #{down_sampling.5} parent=11 // pred_check_branch
        %120 = sbr.rel (%p118) target = $region16
      $region15: #{down_sampling.5} parent=11 // pred_region
        _
      $region16: #{down_sampling.5} parent=11 // pred_fallthru
        _
      // Predicated region
      $region17: #{down_sampling.5} parent=11 // pred_check
        %p121 = pneg %p77
      $region18: #{down_sampling.5} parent=11 // pred_check_branch
        %123 = sbr.rel (%p121) target = $region20
      $region19: #{down_sampling.5} parent=11 // pred_region
        _
      $region20: #{down_sampling.5} parent=11 // pred_fallthru
        _
    $region12: #{down_sampling.5} parent=5 // pred_fallthru
      _
    %p124 = scmp.lt.s32.totalorder %s9, 2
    // Predicated region
    $region21: #{down_sampling.5} parent=5 // pred_check
      %p125 = pneg %p124
    $region22: #{down_sampling.5} parent=5 // pred_check_branch
      %127 = sbr.rel (%p125) target = $region24
    $region23: #{down_sampling.5} parent=5 // pred_region
      // Predicated region
      $region25: #{down_sampling.5} parent=23 // pred_check
        %p128 = pneg %p29
      $region26: #{down_sampling.5} parent=23 // pred_check_branch
        %130 = sbr.rel (%p128) target = $region28
      $region27: #{down_sampling.5} parent=23 // pred_region
        %p131 = scmp.lt.s32.totalorder %s9, 1
        %s132 = scalar_select %p131, %s9, 1
        %s133 = smul.addr %s132, 8
        %s134 = scalar_lea.vmem %s0, %s133
      $region28: #{down_sampling.5} parent=23 // pred_fallthru
        _
    $region24: #{down_sampling.5} parent=5 // pred_fallthru
      _
    %p135 = scmp.le.s32.totalorder 1, %s9
    %p136 = scmp.lt.s32.totalorder %s9, 3
    %p137 = pnand %p135, %p136
    %p138 = pneg %p137
    // Predicated region
    $region29: #{down_sampling.5} parent=5 // pred_check
      _
    $region30: #{down_sampling.5} parent=5 // pred_check_branch
      %140 = sbr.rel (%p137) target = $region32
    $region31: #{down_sampling.5} parent=5 // pred_region
      %s141 = ssub.s32 %s9, 1
      %p142 = scmp.lt.s32.totalorder %s14, 1
      %s143 = scalar_select %p142, %s14, 1
      %s144 = smul.addr %s143, 8
      %s145 = scalar_lea.vmem %s0, %s144
      %p146 = pneg %p35
      %p147 = pneg %p32
      %p148 = pneg %p56
      %p149 = pneg %p53
      %p150 = pneg %p77
      %p151 = pneg %p74
      %p152 = pneg %p103
      %p153 = pneg %p100
      %p154 = scmp.lt.s32.totalorder %s14, 1
      %s155 = scalar_select %p154, %s14, 1
      %s156 = smul.addr %s155, 8
      %s157 = scalar_lea.vmem %s3, %s156
      %p158 = scmp.lt.s32.totalorder %s14, 1
      %s159 = scalar_select %p158, %s14, 1
      %s160 = smul.addr %s159, 8
      %s161 = scalar_lea.vmem %s0, %s160
      %p162 = scmp.lt.s32.totalorder %s14, 1
      %s163 = scalar_select %p162, %s14, 1
      %s164 = smul.addr %s163, 8
      %s165 = scalar_lea.vmem %s3, %s164
      %v166 = vld [vmem:[%s1] sm:$0xff]
      %v167 = vld [vmem:[%s2] sm:$0xff]
      %v168 = vld [vmem:[%s161] sm:$0xff]
      %170 = vset.pattern.permute.xlu0 0
      %171 = vperm.xlu0 %170, %v166
      %v172 = vpop.permute.xlu0 %171
      %v174 = vmul.f32 %v168, %v172
      %176 = vset.pattern.permute.xlu0 0
      %177 = vperm.xlu0 %176, %v167
      %v178 = vpop.permute.xlu0 %177
      %v180 = vadd.f32 %v174, %v178
      %v181 = vmax.f32 %v180, 0.0
      %183 = vrot.lane.b32.xlu0 %v181, 126
      %v184 = vpop.permute.xlu0 %183
      %186 = vrot.lane.b32.xlu0 %v181, 124
      %v187 = vpop.permute.xlu0 %186
      %189 = vrot.lane.b32.xlu0 %v181, 122
      %v190 = vpop.permute.xlu0 %189
      %192 = vrot.lane.b32.xlu0 %v181, 120
      %v193 = vpop.permute.xlu0 %192
      %195 = vrot.lane.b32.xlu0 %v181, 118
      %v196 = vpop.permute.xlu0 %195
      %198 = vrot.lane.b32.xlu0 %v181, 116
      %v199 = vpop.permute.xlu0 %198
      %201 = vrot.lane.b32.xlu0 %v181, 114
      %v202 = vpop.permute.xlu0 %201
      %vm204 = vcmask 64512
      %v205 = vsel %vm204, %v181, %v184
      %vm206 = vcmask 130048
      %v207 = vsel %vm206, %v205, %v187
      %vm208 = vcmask 195584
      %v209 = vsel %vm208, %v207, %v190
      %vm210 = vcmask 261120
      %v211 = vsel %vm210, %v209, %v193
      %vm212 = vcmask 326656
      %v213 = vsel %vm212, %v211, %v196
      %vm214 = vcmask 392192
      %v215 = vsel %vm214, %v213, %v199
      %vm216 = vcmask 457728
      %v217 = vsel %vm216, %v215, %v202
      %vm218 = vcmask 523264
      %219 = vst.msk [vmem:[%s165] sm:$0xff] %vm218, %v217
      %p220 = scmp.lt.s32.totalorder %s14, 1
      %s221 = scalar_select %p220, %s14, 1
      %s222 = smul.addr %s221, 8
      %s223 = scalar_lea.vmem %s3, %s222
      // Predicated region
      $region33: #{down_sampling.5} parent=31 // pred_check
        %p224 = pneg %p100
      $region34: #{down_sampling.5} parent=31 // pred_check_branch
        %226 = sbr.rel (%p224) target = $region36
      $region35: #{down_sampling.5} parent=31 // pred_region
        _
      $region36: #{down_sampling.5} parent=31 // pred_fallthru
        _
    $region32: #{down_sampling.5} parent=5 // pred_fallthru
      _
    %p227 = scmp.le.s32.totalorder 2, %s9
    // Predicated region
    $region37: #{down_sampling.5} parent=5 // pred_check
      %p228 = pneg %p227
    $region38: #{down_sampling.5} parent=5 // pred_check_branch
      %230 = sbr.rel (%p228) target = $region40
    $region39: #{down_sampling.5} parent=5 // pred_region
      %s231 = ssub.s32 %s9, 2
      // Predicated region
      $region41: #{down_sampling.5} parent=39 // pred_check
        %p232 = pneg %p106
      $region42: #{down_sampling.5} parent=39 // pred_check_branch
        %234 = sbr.rel (%p232) target = $region44
      $region43: #{down_sampling.5} parent=39 // pred_region
        %p235 = scmp.lt.s32.totalorder %s15, 1
        %s236 = scalar_select %p235, %s15, 1
        %s237 = smul.addr %s236, 8
        %s238 = scalar_lea.vmem %s3, %s237
      $region44: #{down_sampling.5} parent=39 // pred_fallthru
        _
    $region40: #{down_sampling.5} parent=5 // pred_fallthru
      _
  $region6: #{down_sampling.5} parent=0 // loop_footer
    %s13 = sadd.s32 1, %s9
  $region7: #{down_sampling.5} parent=0 // loop_footer_branch
    %8 = sbr.rel target = $region3
  $region8: #{down_sampling.5} parent=0 // loop_exit
    _

// kernel: down_sampling.4
$region0: #{down_sampling.4}
  #allocation0 [shape = 'u32[]', space=smem, size = 0x4, offset = 0x4, fixed_abs, tag = 'smem constant byte address 0x4 - core index']
  #allocation1 [shape = 'u32[144,128]{1,0:T(1,128)}', space=vmem, size = 0x12000, scoped, tag = 'internal scratch']
  %s0 = inlined_call_operand.vmem [shape: f32[2,8,128], index: 0, kind: input, shape index: {}]
  %s1 = inlined_call_operand.vmem [shape: f32[8,1], index: 1, kind: input, shape index: {}]
  %s2 = inlined_call_operand.vmem [shape: f32[8,1], index: 2, kind: input, shape index: {}]
  %s3 = inlined_call_operand.vmem [shape: f32[8,72], index: 3, kind: input, shape index: {}]
  %s4 = inlined_call_operand.vmem [shape: f32[1,128], index: 4, kind: input, shape index: {}]
  %s5 = inlined_call_operand.vmem [shape: f32[2,8,128], index: 5, kind: output, shape index: {}]
  %s6 = sld [smem:[#allocation0]]
  $region53: #{down_sampling.4} parent=0
    _
  %s8 = ssub.s32 1, %s6
  %s9 = scalar_select 0, %s8, %s6
  loop: start=0, step=1, limit=4
  $region2: #{down_sampling.4} parent=0 // loop_pre_header
    _
  $region3: #{down_sampling.4} parent=0 // loop_header
    %s11 = sphi 0, %s15
    %p12 = scmp.ge.s32.totalorder %s11, 4
    %s21 = sphi 0, %s23
    %s24 = sphi 0, %s21
    %s25 = sphi 0, %s24
    %s41 = sphi 0, %s25
    %s45 = sphi 0, %s45
    %s47 = sphi 0, %s45
    %s48 = sphi 0, %s47
    %s62 = sphi 0, %s48
    %s66 = sphi 0, %s66
    %s68 = sphi 0, %s66
    %s69 = sphi 0, %s68
    %s83 = sphi 0, %s69
    %s87 = sphi 0, %s87
    %s89 = sphi 0, %s87
    %s90 = sphi 0, %s89
    %s104 = sphi 0, %s90
    %s108 = sphi 0, %s108
    %s110 = sphi 0, %s108
    %s111 = sphi 0, %s110
    %s125 = sphi 0, %s111
    %s131 = sphi 0, %s133
    %s134 = sphi 0, %s131
    %s135 = sphi 0, %s134
    %s151 = sphi 0, %s135
  $region4: #{down_sampling.4} parent=0 // loop_header_branch
    %14 = sbr.rel (%p12) target = $region8
  $region5: #{down_sampling.4} parent=0 // loop_body
    %s16 = ssub.s32 %s11, 1
    %s17 = ssub.s32 %s11, 2
    %s18 = sadd.s32 %s11, 1
    %s19 = ssub.s32 %s11, %s18
    %p20 = scmp.eq.s32.totalorder %s19, 0
    %s22 = sadd.s32 %s21, 1
    %s23 = scalar_select %p20, %s21, %s22
    %p26 = pneg %p20
    %p27 = scmp.eq.s32.totalorder %s11, 1
    %p28 = por %p26, %p27
    %p29 = scmp.ne.s32.totalorder %s21, %s24
    %p30 = scmp.eq.s32.totalorder %s11, 0
    %p31 = por %p29, %p30
    %p32 = scmp.ne.s32.totalorder %s21, %s24
    %p33 = scmp.eq.s32.totalorder %s16, 1
    %p34 = por %p32, %p33
    %p35 = scmp.ne.s32.totalorder %s24, %s25
    %p36 = scmp.eq.s32.totalorder %s16, 0
    %p37 = por %p35, %p36
    %p38 = scmp.ne.s32.totalorder %s24, %s25
    %p39 = scmp.eq.s32.totalorder %s17, 1
    %p40 = por %p38, %p39
    %p42 = scmp.ne.s32.totalorder %s25, %s41
    %p43 = scmp.eq.s32.totalorder %s17, 0
    %p44 = por %p42, %p43
    %s46 = sadd.s32 %s45, 1
    %p49 = scmp.eq.s32.totalorder %s11, 1
    %p50 = scmp.ne.s32.totalorder %s45, %s47
    %p51 = scmp.eq.s32.totalorder %s11, 0
    %p52 = por %p50, %p51
    %p53 = scmp.ne.s32.totalorder %s45, %s47
    %p54 = scmp.eq.s32.totalorder %s16, 1
    %p55 = por %p53, %p54
    %p56 = scmp.ne.s32.totalorder %s47, %s48
    %p57 = scmp.eq.s32.totalorder %s16, 0
    %p58 = por %p56, %p57
    %p59 = scmp.ne.s32.totalorder %s47, %s48
    %p60 = scmp.eq.s32.totalorder %s17, 1
    %p61 = por %p59, %p60
    %p63 = scmp.ne.s32.totalorder %s48, %s62
    %p64 = scmp.eq.s32.totalorder %s17, 0
    %p65 = por %p63, %p64
    %s67 = sadd.s32 %s66, 1
    %p70 = scmp.eq.s32.totalorder %s11, 1
    %p71 = scmp.ne.s32.totalorder %s66, %s68
    %p72 = scmp.eq.s32.totalorder %s11, 0
    %p73 = por %p71, %p72
    %p74 = scmp.ne.s32.totalorder %s66, %s68
    %p75 = scmp.eq.s32.totalorder %s16, 1
    %p76 = por %p74, %p75
    %p77 = scmp.ne.s32.totalorder %s68, %s69
    %p78 = scmp.eq.s32.totalorder %s16, 0
    %p79 = por %p77, %p78
    %p80 = scmp.ne.s32.totalorder %s68, %s69
    %p81 = scmp.eq.s32.totalorder %s17, 1
    %p82 = por %p80, %p81
    %p84 = scmp.ne.s32.totalorder %s69, %s83
    %p85 = scmp.eq.s32.totalorder %s17, 0
    %p86 = por %p84, %p85
    %s88 = sadd.s32 %s87, 1
    %p91 = scmp.eq.s32.totalorder %s11, 1
    %p92 = scmp.ne.s32.totalorder %s87, %s89
    %p93 = scmp.eq.s32.totalorder %s11, 0
    %p94 = por %p92, %p93
    %p95 = scmp.ne.s32.totalorder %s87, %s89
    %p96 = scmp.eq.s32.totalorder %s16, 1
    %p97 = por %p95, %p96
    %p98 = scmp.ne.s32.totalorder %s89, %s90
    %p99 = scmp.eq.s32.totalorder %s16, 0
    %p100 = por %p98, %p99
    %p101 = scmp.ne.s32.totalorder %s89, %s90
    %p102 = scmp.eq.s32.totalorder %s17, 1
    %p103 = por %p101, %p102
    %p105 = scmp.ne.s32.totalorder %s90, %s104
    %p106 = scmp.eq.s32.totalorder %s17, 0
    %p107 = por %p105, %p106
    %s109 = sadd.s32 %s108, 1
    %p112 = scmp.eq.s32.totalorder %s11, 1
    %p113 = scmp.ne.s32.totalorder %s108, %s110
    %p114 = scmp.eq.s32.totalorder %s11, 0
    %p115 = por %p113, %p114
    %p116 = scmp.ne.s32.totalorder %s108, %s110
    %p117 = scmp.eq.s32.totalorder %s16, 1
    %p118 = por %p116, %p117
    %p119 = scmp.ne.s32.totalorder %s110, %s111
    %p120 = scmp.eq.s32.totalorder %s16, 0
    %p121 = por %p119, %p120
    %p122 = scmp.ne.s32.totalorder %s110, %s111
    %p123 = scmp.eq.s32.totalorder %s17, 1
    %p124 = por %p122, %p123
    %p126 = scmp.ne.s32.totalorder %s111, %s125
    %p127 = scmp.eq.s32.totalorder %s17, 0
    %p128 = por %p126, %p127
    %s129 = ssub.s32 %s11, %s18
    %p130 = scmp.eq.s32.totalorder %s129, 0
    %s132 = sadd.s32 %s131, 1
    %s133 = scalar_select %p130, %s131, %s132
    %p136 = pneg %p130
    %p137 = scmp.eq.s32.totalorder %s11, 1
    %p138 = por %p136, %p137
    %p139 = scmp.ne.s32.totalorder %s131, %s134
    %p140 = scmp.eq.s32.totalorder %s11, 0
    %p141 = por %p139, %p140
    %p142 = scmp.ne.s32.totalorder %s131, %s134
    %p143 = scmp.eq.s32.totalorder %s16, 1
    %p144 = por %p142, %p143
    %p145 = scmp.ne.s32.totalorder %s134, %s135
    %p146 = scmp.eq.s32.totalorder %s16, 0
    %p147 = por %p145, %p146
    %p148 = scmp.ne.s32.totalorder %s134, %s135
    %p149 = scmp.eq.s32.totalorder %s17, 1
    %p150 = por %p148, %p149
    %p152 = scmp.ne.s32.totalorder %s135, %s151
    %p153 = scmp.eq.s32.totalorder %s17, 0
    %p154 = por %p152, %p153
    %p155 = scmp.le.s32.totalorder 1, %s11
    %p156 = scmp.lt.s32.totalorder %s11, 3
    %p157 = pnand %p155, %p156
    %p158 = pneg %p157
    // Predicated region
    $region9: #{down_sampling.4} parent=5 // pred_check
      _
    $region10: #{down_sampling.4} parent=5 // pred_check_branch
      %160 = sbr.rel (%p157) target = $region12
    $region11: #{down_sampling.4} parent=5 // pred_region
      %s161 = ssub.s32 %s11, 1
      // Predicated region
      $region13: #{down_sampling.4} parent=11 // pred_check
        %p162 = pneg %p58
      $region14: #{down_sampling.4} parent=11 // pred_check_branch
        %164 = sbr.rel (%p162) target = $region16
      $region15: #{down_sampling.4} parent=11 // pred_region
        _
      $region16: #{down_sampling.4} parent=11 // pred_fallthru
        _
      // Predicated region
      $region17: #{down_sampling.4} parent=11 // pred_check
        %p165 = pneg %p79
      $region18: #{down_sampling.4} parent=11 // pred_check_branch
        %167 = sbr.rel (%p165) target = $region20
      $region19: #{down_sampling.4} parent=11 // pred_region
        _
      $region20: #{down_sampling.4} parent=11 // pred_fallthru
        _
      // Predicated region
      $region21: #{down_sampling.4} parent=11 // pred_check
        %p168 = pneg %p100
      $region22: #{down_sampling.4} parent=11 // pred_check_branch
        %170 = sbr.rel (%p168) target = $region24
      $region23: #{down_sampling.4} parent=11 // pred_region
        _
      $region24: #{down_sampling.4} parent=11 // pred_fallthru
        _
      // Predicated region
      $region25: #{down_sampling.4} parent=11 // pred_check
        %p171 = pneg %p121
      $region26: #{down_sampling.4} parent=11 // pred_check_branch
        %173 = sbr.rel (%p171) target = $region28
      $region27: #{down_sampling.4} parent=11 // pred_region
        _
      $region28: #{down_sampling.4} parent=11 // pred_fallthru
        _
    $region12: #{down_sampling.4} parent=5 // pred_fallthru
      _
    %p174 = scmp.lt.s32.totalorder %s11, 2
    // Predicated region
    $region29: #{down_sampling.4} parent=5 // pred_check
      %p175 = pneg %p174
    $region30: #{down_sampling.4} parent=5 // pred_check_branch
      %177 = sbr.rel (%p175) target = $region32
    $region31: #{down_sampling.4} parent=5 // pred_region
      // Predicated region
      $region33: #{down_sampling.4} parent=31 // pred_check
        %p178 = pneg %p31
      $region34: #{down_sampling.4} parent=31 // pred_check_branch
        %180 = sbr.rel (%p178) target = $region36
      $region35: #{down_sampling.4} parent=31 // pred_region
        %p181 = scmp.lt.s32.totalorder %s11, 1
        %s182 = scalar_select %p181, %s11, 1
        %s183 = smul.addr %s182, 8
        %s184 = scalar_lea.vmem %s0, %s183
      $region36: #{down_sampling.4} parent=31 // pred_fallthru
        _
    $region32: #{down_sampling.4} parent=5 // pred_fallthru
      _
    %p185 = scmp.le.s32.totalorder 1, %s11
    %p186 = scmp.lt.s32.totalorder %s11, 3
    %p187 = pnand %p185, %p186
    %p188 = pneg %p187
    // Predicated region
    $region37: #{down_sampling.4} parent=5 // pred_check
      _
    $region38: #{down_sampling.4} parent=5 // pred_check_branch
      %190 = sbr.rel (%p187) target = $region40
    $region39: #{down_sampling.4} parent=5 // pred_region
      %s191 = ssub.s32 %s11, 1
      %p192 = scmp.lt.s32.totalorder %s16, 1
      %s193 = scalar_select %p192, %s16, 1
      %s194 = smul.addr %s193, 8
      %s195 = scalar_lea.vmem %s0, %s194
      %p196 = pneg %p37
      %p197 = pneg %p34
      %p198 = pneg %p58
      %p199 = pneg %p55
      %p200 = pneg %p79
      %p201 = pneg %p76
      %p202 = pneg %p100
      %p203 = pneg %p97
      %p204 = pneg %p121
      %p205 = pneg %p118
      %p206 = pneg %p147
      %p207 = pneg %p144
      %p208 = scmp.lt.s32.totalorder %s16, 1
      %s209 = scalar_select %p208, %s16, 1
      %s210 = smul.addr %s209, 8
      %s211 = scalar_lea.vmem %s5, %s210
      %p212 = scmp.lt.s32.totalorder %s16, 1
      %s213 = scalar_select %p212, %s16, 1
      %s214 = smul.addr %s213, 8
      %s215 = scalar_lea.vmem %s0, %s214
      %p216 = scmp.lt.s32.totalorder %s16, 1
      %s217 = scalar_select %p216, %s16, 1
      %s218 = smul.addr %s217, 8
      %s219 = scalar_lea.vmem %s5, %s218
      %v220 = vld [vmem:[%s1] sm:$0xff]
      %v221 = vld [vmem:[%s2] sm:$0xff]
      %v222 = vld [vmem:[%s4] sm:$0x1]
      %v223 = vld [vmem:[%s215] sm:$0xff]
      %225 = vset.pattern.permute.xlu0 0
      %226 = vperm.xlu0 %225, %v220
      %v227 = vpop.permute.xlu0 %226
      %v229 = vmul.f32 %v223, %v227
      %231 = vset.pattern.permute.xlu0 0
      %232 = vperm.xlu0 %231, %v221
      %v233 = vpop.permute.xlu0 %232
      %v235 = vadd.f32 %v229, %v233
      %v236 = vmax.f32 %v235, 0.0
      %v238 = vlaneseq
      %v239 = vshrl.u32 %v238, 7
      %v240 = vsub.s32 0, %v239
      %v241 = vrot.slane %v222, %v240
      %v243 = vmul.f32 %v236, %v241
      %245 = vrot.lane.b32.xlu0 %v243, 11
      %v246 = vpop.permute.xlu0 %245
      %vm248 = vcmask 89088
      %v249 = vsel %vm248, 0.0, %v246
      %vm250 = vcmask 728064
      %v251 = vsel %vm250, %v249, 0.0
      %254 = vrot.lane.b32.xlu0 %v251, 127
      %v255 = vpop.permute.xlu0 %254
      %256 = vrot.lane.b32.xlu0 0.0, 127
      %v257 = vpop.permute.xlu0 %256
      %vm258 = vcmask 1039360
      %v259 = vsel %vm258, %v255, %v257
      %261 = vrot.lane.b32.xlu0 %v251, 126
      %v262 = vpop.permute.xlu0 %261
      %263 = vrot.lane.b32.xlu0 0.0, 126
      %v264 = vpop.permute.xlu0 %263
      %vm265 = vcmask 1031168
      %v266 = vsel %vm265, %v262, %v264
      %268 = vrot.lane.b32.xlu0 %v251, 118
      %v269 = vpop.permute.xlu0 %268
      %270 = vrot.lane.b32.xlu0 0.0, 118
      %v271 = vpop.permute.xlu0 %270
      %vm272 = vcmask 965632
      %v273 = vsel %vm272, %v269, %v271
      %275 = vrot.lane.b32.xlu0 %v251, 117
      %v276 = vpop.permute.xlu0 %275
      %277 = vrot.lane.b32.xlu0 0.0, 117
      %v278 = vpop.permute.xlu0 %277
      %vm279 = vcmask 957440
      %v280 = vsel %vm279, %v276, %v278
      %282 = vrot.lane.b32.xlu0 %v251, 116
      %v283 = vpop.permute.xlu0 %282
      %284 = vrot.lane.b32.xlu0 0.0, 116
      %v285 = vpop.permute.xlu0 %284
      %vm286 = vcmask 949248
      %v287 = vsel %vm286, %v283, %v285
      %289 = vrot.lane.b32.xlu0 %v251, 108
      %v290 = vpop.permute.xlu0 %289
      %291 = vrot.lane.b32.xlu0 0.0, 108
      %v292 = vpop.permute.xlu0 %291
      %vm293 = vcmask 883712
      %v294 = vsel %vm293, %v290, %v292
      %296 = vrot.lane.b32.xlu0 %v251, 107
      %v297 = vpop.permute.xlu0 %296
      %298 = vrot.lane.b32.xlu0 0.0, 107
      %v299 = vpop.permute.xlu0 %298
      %vm300 = vcmask 875520
      %v301 = vsel %vm300, %v297, %v299
      %303 = vrot.lane.b32.xlu0 %v251, 106
      %v304 = vpop.permute.xlu0 %303
      %305 = vrot.lane.b32.xlu0 0.0, 106
      %v306 = vpop.permute.xlu0 %305
      %vm307 = vcmask 867328
      %v308 = vsel %vm307, %v304, %v306
      %v310 = vld [vmem:[%s3] sm:$0xff]
      %vm311 = vcmask 588800
      %v313 = vsel %vm311, %v310, 0
      %315 = vmatprep.subr.mxu0 0.0
      %316 = vmatpush1.msra.mxu0 %v251
      %317 = vmatprep.subr.mxu0 0.0
      %318 = vmatpush1.msra.mxu0 %v259
      %319 = vmatprep.subr.mxu0 0.0
      %320 = vmatpush1.msra.mxu0 %v266
      %321 = vmatprep.subr.mxu0 0.0
      %322 = vmatpush1.msra.mxu0 %v273
      %323 = vmatprep.subr.mxu0 0.0
      %324 = vmatpush1.msra.mxu0 %v280
      %325 = vmatprep.subr.mxu0 0.0
      %326 = vmatpush1.msra.mxu0 %v287
      %327 = vmatprep.subr.mxu0 0.0
      %328 = vmatpush1.msra.mxu0 %v294
      %329 = vmatprep.subr.mxu0 0.0
      %330 = vmatpush1.msra.mxu0 %v301
      %331 = vmatprep.subr.mxu0 0.0
      %332 = vmatpush1.msra.mxu0 %v308
      %333 = vmatprep.subr.mxu0 0.0
      %334 = vmatpush1.msra.mxu0 0.0
      %335 = vmatprep.subr.mxu0 0.0
      %336 = vmatpush1.msra.mxu0 0.0
      %337 = vmatprep.subr.mxu0 0.0
      %338 = vmatpush1.msra.mxu0 0.0
      %339 = vmatprep.subr.mxu0 0.0
      %340 = vmatpush1.msra.mxu0 0.0
      %341 = vmatprep.subr.mxu0 0.0
      %342 = vmatpush1.msra.mxu0 0.0
      %343 = vmatprep.subr.mxu0 0.0
      %344 = vmatpush1.msra.mxu0 0.0
      %345 = vmatprep.subr.mxu0 0.0
      %346 = vmatpush1.msra.mxu0 0.0
      %347 = vmatprep.subr.mxu0 0.0
      %348 = vmatpush1.msra.mxu0 0.0
      %349 = vmatprep.subr.mxu0 0.0
      %350 = vmatpush1.msra.mxu0 0.0
      %351 = vmatprep.subr.mxu0 0.0
      %352 = vmatpush1.msra.mxu0 0.0
      %353 = vmatprep.subr.mxu0 0.0
      %354 = vmatpush1.msra.mxu0 0.0
      %355 = vmatprep.subr.mxu0 0.0
      %356 = vmatpush1.msra.mxu0 0.0
      %357 = vmatprep.subr.mxu0 0.0
      %358 = vmatpush1.msra.mxu0 0.0
      %359 = vmatprep.subr.mxu0 0.0
      %360 = vmatpush1.msra.mxu0 0.0
      %361 = vmatprep.subr.mxu0 0.0
      %362 = vmatpush1.msra.mxu0 0.0
      %363 = vmatprep.subr.mxu0 0.0
      %364 = vmatpush1.msra.mxu0 0.0
      %365 = vmatprep.subr.mxu0 0.0
      %366 = vmatpush1.msra.mxu0 0.0
      %367 = vmatprep.subr.mxu0 0.0
      %368 = vmatpush1.msra.mxu0 0.0
      %369 = vmatprep.subr.mxu0 0.0
      %370 = vmatpush1.msra.mxu0 0.0
      %371 = vmatprep.subr.mxu0 0.0
      %372 = vmatpush1.msra.mxu0 0.0
      %373 = vmatprep.subr.mxu0 0.0
      %374 = vmatpush1.msra.mxu0 0.0
      %375 = vmatprep.subr.mxu0 0.0
      %376 = vmatpush1.msra.mxu0 0.0
      %377 = vmatprep.subr.mxu0 0.0
      %378 = vmatpush1.msra.mxu0 0.0
      %379 = vmatprep.mubr.f32.mxu0 0.0
      %380 = vmatmul.mubr.f32.gmra.mrb[0].mxu0 %v313
      %v381 = vpop.f32.mrb[0].mxu0
      %v382 = vadd.f32 0.0, %v381
      %v383 = vpop.f32.mrb[0].mxu0
      %384 = vdwg.mxu0
      %v385 = vmul.f32 %v382, %v241
      %386 = vst [vmem:[%s219] sm:$0xff] %v385
      %vm387 = vcmask 637952
      %v388 = vsel %vm387, %v385, 0.0
      %389 = vadd.xlane.f32.xlu0 %v388
      %v390 = vpop.xlane.xlu0 %389
      %v391 = vmul.f32 %v385, %v385
      %v392 = vsel %vm387, %v391, 0.0
      %393 = vadd.xlane.f32.xlu0 %v392
      %v394 = vpop.xlane.xlu0 %393
      %vm395 = vcmask 7168
      %v396 = vsel %vm395, %v390, %v394
      %398 = vrot.lane.b32.xlu0 %v396, 78
      %v399 = vpop.permute.xlu0 %398
      %vm401 = vcmask 654960
      %402 = vst.msk [vmem:[%s219] sm:$0xff] %vm401, %v399
      %p403 = scmp.lt.s32.totalorder %s16, 1
      %s404 = scalar_select %p403, %s16, 1
      %s405 = smul.addr %s404, 8
      %s406 = scalar_lea.vmem %s5, %s405
      // Predicated region
      $region41: #{down_sampling.4} parent=39 // pred_check
        %p407 = pneg %p144
      $region42: #{down_sampling.4} parent=39 // pred_check_branch
        %409 = sbr.rel (%p407) target = $region44
      $region43: #{down_sampling.4} parent=39 // pred_region
        _
      $region44: #{down_sampling.4} parent=39 // pred_fallthru
        _
    $region40: #{down_sampling.4} parent=5 // pred_fallthru
      _
    %p410 = scmp.le.s32.totalorder 2, %s11
    // Predicated region
    $region45: #{down_sampling.4} parent=5 // pred_check
      %p411 = pneg %p410
    $region46: #{down_sampling.4} parent=5 // pred_check_branch
      %413 = sbr.rel (%p411) target = $region48
    $region47: #{down_sampling.4} parent=5 // pred_region
      %s414 = ssub.s32 %s11, 2
      // Predicated region
      $region49: #{down_sampling.4} parent=47 // pred_check
        %p415 = pneg %p150
      $region50: #{down_sampling.4} parent=47 // pred_check_branch
        %417 = sbr.rel (%p415) target = $region52
      $region51: #{down_sampling.4} parent=47 // pred_region
        %p418 = scmp.lt.s32.totalorder %s17, 1
        %s419 = scalar_select %p418, %s17, 1
        %s420 = smul.addr %s419, 8
        %s421 = scalar_lea.vmem %s5, %s420
      $region52: #{down_sampling.4} parent=47 // pred_fallthru
        _
    $region48: #{down_sampling.4} parent=5 // pred_fallthru
      _
  $region6: #{down_sampling.4} parent=0 // loop_footer
    %s15 = sadd.s32 1, %s11
  $region7: #{down_sampling.4} parent=0 // loop_footer_branch
    %10 = sbr.rel target = $region3
  $region8: #{down_sampling.4} parent=0 // loop_exit
    _

// kernel: down_sampling.3
$region0: #{down_sampling.3}
  #allocation0 [shape = 'u32[]', space=smem, size = 0x4, offset = 0x4, fixed_abs, tag = 'smem constant byte address 0x4 - core index']
  #allocation1 [shape = 'u32[144,128]{1,0:T(1,128)}', space=vmem, size = 0x12000, scoped, tag = 'internal scratch']
  %s0 = inlined_call_operand.vmem [shape: f32[2,32,32], index: 0, kind: input, shape index: {}]
  %s1 = inlined_call_operand.vmem [shape: f32[32,10], index: 1, kind: input, shape index: {}]
  %s2 = inlined_call_operand.vmem [shape: f32[32,10], index: 2, kind: input, shape index: {}]
  %s3 = inlined_call_operand.vmem [shape: f32[32,10], index: 3, kind: input, shape index: {}]
  %s4 = inlined_call_operand.vmem [shape: f32[32,10], index: 4, kind: input, shape index: {}]
  %s5 = inlined_call_operand.vmem [shape: f32[8,36], index: 5, kind: input, shape index: {}]
  %s6 = inlined_call_operand.vmem [shape: f32[1,128], index: 6, kind: input, shape index: {}]
  %s7 = inlined_call_operand.vmem [shape: f32[2,8,128], index: 7, kind: output, shape index: {}]
  %s8 = sld [smem:[#allocation0]]
  $region61: #{down_sampling.3} parent=0
    _
  %s10 = ssub.s32 1, %s8
  %s11 = scalar_select 0, %s10, %s8
  loop: start=0, step=1, limit=4
  $region2: #{down_sampling.3} parent=0 // loop_pre_header
    _
  $region3: #{down_sampling.3} parent=0 // loop_header
    %s13 = sphi 0, %s17
    %p14 = scmp.ge.s32.totalorder %s13, 4
    %s23 = sphi 0, %s25
    %s26 = sphi 0, %s23
    %s27 = sphi 0, %s26
    %s43 = sphi 0, %s27
    %s47 = sphi 0, %s47
    %s49 = sphi 0, %s47
    %s50 = sphi 0, %s49
    %s64 = sphi 0, %s50
    %s68 = sphi 0, %s68
    %s70 = sphi 0, %s68
    %s71 = sphi 0, %s70
    %s85 = sphi 0, %s71
    %s89 = sphi 0, %s89
    %s91 = sphi 0, %s89
    %s92 = sphi 0, %s91
    %s106 = sphi 0, %s92
    %s110 = sphi 0, %s110
    %s112 = sphi 0, %s110
    %s113 = sphi 0, %s112
    %s127 = sphi 0, %s113
    %s131 = sphi 0, %s131
    %s133 = sphi 0, %s131
    %s134 = sphi 0, %s133
    %s148 = sphi 0, %s134
    %s152 = sphi 0, %s152
    %s154 = sphi 0, %s152
    %s155 = sphi 0, %s154
    %s169 = sphi 0, %s155
    %s175 = sphi 0, %s177
    %s178 = sphi 0, %s175
    %s179 = sphi 0, %s178
    %s195 = sphi 0, %s179
  $region4: #{down_sampling.3} parent=0 // loop_header_branch
    %16 = sbr.rel (%p14) target = $region8
  $region5: #{down_sampling.3} parent=0 // loop_body
    %s18 = ssub.s32 %s13, 1
    %s19 = ssub.s32 %s13, 2
    %s20 = sadd.s32 %s13, 1
    %s21 = ssub.s32 %s13, %s20
    %p22 = scmp.eq.s32.totalorder %s21, 0
    %s24 = sadd.s32 %s23, 1
    %s25 = scalar_select %p22, %s23, %s24
    %p28 = pneg %p22
    %p29 = scmp.eq.s32.totalorder %s13, 1
    %p30 = por %p28, %p29
    %p31 = scmp.ne.s32.totalorder %s23, %s26
    %p32 = scmp.eq.s32.totalorder %s13, 0
    %p33 = por %p31, %p32
    %p34 = scmp.ne.s32.totalorder %s23, %s26
    %p35 = scmp.eq.s32.totalorder %s18, 1
    %p36 = por %p34, %p35
    %p37 = scmp.ne.s32.totalorder %s26, %s27
    %p38 = scmp.eq.s32.totalorder %s18, 0
    %p39 = por %p37, %p38
    %p40 = scmp.ne.s32.totalorder %s26, %s27
    %p41 = scmp.eq.s32.totalorder %s19, 1
    %p42 = por %p40, %p41
    %p44 = scmp.ne.s32.totalorder %s27, %s43
    %p45 = scmp.eq.s32.totalorder %s19, 0
    %p46 = por %p44, %p45
    %s48 = sadd.s32 %s47, 1
    %p51 = scmp.eq.s32.totalorder %s13, 1
    %p52 = scmp.ne.s32.totalorder %s47, %s49
    %p53 = scmp.eq.s32.totalorder %s13, 0
    %p54 = por %p52, %p53
    %p55 = scmp.ne.s32.totalorder %s47, %s49
    %p56 = scmp.eq.s32.totalorder %s18, 1
    %p57 = por %p55, %p56
    %p58 = scmp.ne.s32.totalorder %s49, %s50
    %p59 = scmp.eq.s32.totalorder %s18, 0
    %p60 = por %p58, %p59
    %p61 = scmp.ne.s32.totalorder %s49, %s50
    %p62 = scmp.eq.s32.totalorder %s19, 1
    %p63 = por %p61, %p62
    %p65 = scmp.ne.s32.totalorder %s50, %s64
    %p66 = scmp.eq.s32.totalorder %s19, 0
    %p67 = por %p65, %p66
    %s69 = sadd.s32 %s68, 1
    %p72 = scmp.eq.s32.totalorder %s13, 1
    %p73 = scmp.ne.s32.totalorder %s68, %s70
    %p74 = scmp.eq.s32.totalorder %s13, 0
    %p75 = por %p73, %p74
    %p76 = scmp.ne.s32.totalorder %s68, %s70
    %p77 = scmp.eq.s32.totalorder %s18, 1
    %p78 = por %p76, %p77
    %p79 = scmp.ne.s32.totalorder %s70, %s71
    %p80 = scmp.eq.s32.totalorder %s18, 0
    %p81 = por %p79, %p80
    %p82 = scmp.ne.s32.totalorder %s70, %s71
    %p83 = scmp.eq.s32.totalorder %s19, 1
    %p84 = por %p82, %p83
    %p86 = scmp.ne.s32.totalorder %s71, %s85
    %p87 = scmp.eq.s32.totalorder %s19, 0
    %p88 = por %p86, %p87
    %s90 = sadd.s32 %s89, 1
    %p93 = scmp.eq.s32.totalorder %s13, 1
    %p94 = scmp.ne.s32.totalorder %s89, %s91
    %p95 = scmp.eq.s32.totalorder %s13, 0
    %p96 = por %p94, %p95
    %p97 = scmp.ne.s32.totalorder %s89, %s91
    %p98 = scmp.eq.s32.totalorder %s18, 1
    %p99 = por %p97, %p98
    %p100 = scmp.ne.s32.totalorder %s91, %s92
    %p101 = scmp.eq.s32.totalorder %s18, 0
    %p102 = por %p100, %p101
    %p103 = scmp.ne.s32.totalorder %s91, %s92
    %p104 = scmp.eq.s32.totalorder %s19, 1
    %p105 = por %p103, %p104
    %p107 = scmp.ne.s32.totalorder %s92, %s106
    %p108 = scmp.eq.s32.totalorder %s19, 0
    %p109 = por %p107, %p108
    %s111 = sadd.s32 %s110, 1
    %p114 = scmp.eq.s32.totalorder %s13, 1
    %p115 = scmp.ne.s32.totalorder %s110, %s112
    %p116 = scmp.eq.s32.totalorder %s13, 0
    %p117 = por %p115, %p116
    %p118 = scmp.ne.s32.totalorder %s110, %s112
    %p119 = scmp.eq.s32.totalorder %s18, 1
    %p120 = por %p118, %p119
    %p121 = scmp.ne.s32.totalorder %s112, %s113
    %p122 = scmp.eq.s32.totalorder %s18, 0
    %p123 = por %p121, %p122
    %p124 = scmp.ne.s32.totalorder %s112, %s113
    %p125 = scmp.eq.s32.totalorder %s19, 1
    %p126 = por %p124, %p125
    %p128 = scmp.ne.s32.totalorder %s113, %s127
    %p129 = scmp.eq.s32.totalorder %s19, 0
    %p130 = por %p128, %p129
    %s132 = sadd.s32 %s131, 1
    %p135 = scmp.eq.s32.totalorder %s13, 1
    %p136 = scmp.ne.s32.totalorder %s131, %s133
    %p137 = scmp.eq.s32.totalorder %s13, 0
    %p138 = por %p136, %p137
    %p139 = scmp.ne.s32.totalorder %s131, %s133
    %p140 = scmp.eq.s32.totalorder %s18, 1
    %p141 = por %p139, %p140
    %p142 = scmp.ne.s32.totalorder %s133, %s134
    %p143 = scmp.eq.s32.totalorder %s18, 0
    %p144 = por %p142, %p143
    %p145 = scmp.ne.s32.totalorder %s133, %s134
    %p146 = scmp.eq.s32.totalorder %s19, 1
    %p147 = por %p145, %p146
    %p149 = scmp.ne.s32.totalorder %s134, %s148
    %p150 = scmp.eq.s32.totalorder %s19, 0
    %p151 = por %p149, %p150
    %s153 = sadd.s32 %s152, 1
    %p156 = scmp.eq.s32.totalorder %s13, 1
    %p157 = scmp.ne.s32.totalorder %s152, %s154
    %p158 = scmp.eq.s32.totalorder %s13, 0
    %p159 = por %p157, %p158
    %p160 = scmp.ne.s32.totalorder %s152, %s154
    %p161 = scmp.eq.s32.totalorder %s18, 1
    %p162 = por %p160, %p161
    %p163 = scmp.ne.s32.totalorder %s154, %s155
    %p164 = scmp.eq.s32.totalorder %s18, 0
    %p165 = por %p163, %p164
    %p166 = scmp.ne.s32.totalorder %s154, %s155
    %p167 = scmp.eq.s32.totalorder %s19, 1
    %p168 = por %p166, %p167
    %p170 = scmp.ne.s32.totalorder %s155, %s169
    %p171 = scmp.eq.s32.totalorder %s19, 0
    %p172 = por %p170, %p171
    %s173 = ssub.s32 %s13, %s20
    %p174 = scmp.eq.s32.totalorder %s173, 0
    %s176 = sadd.s32 %s175, 1
    %s177 = scalar_select %p174, %s175, %s176
    %p180 = pneg %p174
    %p181 = scmp.eq.s32.totalorder %s13, 1
    %p182 = por %p180, %p181
    %p183 = scmp.ne.s32.totalorder %s175, %s178
    %p184 = scmp.eq.s32.totalorder %s13, 0
    %p185 = por %p183, %p184
    %p186 = scmp.ne.s32.totalorder %s175, %s178
    %p187 = scmp.eq.s32.totalorder %s18, 1
    %p188 = por %p186, %p187
    %p189 = scmp.ne.s32.totalorder %s178, %s179
    %p190 = scmp.eq.s32.totalorder %s18, 0
    %p191 = por %p189, %p190
    %p192 = scmp.ne.s32.totalorder %s178, %s179
    %p193 = scmp.eq.s32.totalorder %s19, 1
    %p194 = por %p192, %p193
    %p196 = scmp.ne.s32.totalorder %s179, %s195
    %p197 = scmp.eq.s32.totalorder %s19, 0
    %p198 = por %p196, %p197
    %p199 = scmp.le.s32.totalorder 1, %s13
    %p200 = scmp.lt.s32.totalorder %s13, 3
    %p201 = pnand %p199, %p200
    %p202 = pneg %p201
    // Predicated region
    $region9: #{down_sampling.3} parent=5 // pred_check
      _
    $region10: #{down_sampling.3} parent=5 // pred_check_branch
      %204 = sbr.rel (%p201) target = $region12
    $region11: #{down_sampling.3} parent=5 // pred_region
      %s205 = ssub.s32 %s13, 1
      // Predicated region
      $region13: #{down_sampling.3} parent=11 // pred_check
        %p206 = pneg %p60
      $region14: #{down_sampling.3} parent=11 // pred_check_branch
        %208 = sbr.rel (%p206) target = $region16
      $region15: #{down_sampling.3} parent=11 // pred_region
        _
      $region16: #{down_sampling.3} parent=11 // pred_fallthru
        _
      // Predicated region
      $region17: #{down_sampling.3} parent=11 // pred_check
        %p209 = pneg %p81
      $region18: #{down_sampling.3} parent=11 // pred_check_branch
        %211 = sbr.rel (%p209) target = $region20
      $region19: #{down_sampling.3} parent=11 // pred_region
        _
      $region20: #{down_sampling.3} parent=11 // pred_fallthru
        _
      // Predicated region
      $region21: #{down_sampling.3} parent=11 // pred_check
        %p212 = pneg %p102
      $region22: #{down_sampling.3} parent=11 // pred_check_branch
        %214 = sbr.rel (%p212) target = $region24
      $region23: #{down_sampling.3} parent=11 // pred_region
        _
      $region24: #{down_sampling.3} parent=11 // pred_fallthru
        _
      // Predicated region
      $region25: #{down_sampling.3} parent=11 // pred_check
        %p215 = pneg %p123
      $region26: #{down_sampling.3} parent=11 // pred_check_branch
        %217 = sbr.rel (%p215) target = $region28
      $region27: #{down_sampling.3} parent=11 // pred_region
        _
      $region28: #{down_sampling.3} parent=11 // pred_fallthru
        _
      // Predicated region
      $region29: #{down_sampling.3} parent=11 // pred_check
        %p218 = pneg %p144
      $region30: #{down_sampling.3} parent=11 // pred_check_branch
        %220 = sbr.rel (%p218) target = $region32
      $region31: #{down_sampling.3} parent=11 // pred_region
        _
      $region32: #{down_sampling.3} parent=11 // pred_fallthru
        _
      // Predicated region
      $region33: #{down_sampling.3} parent=11 // pred_check
        %p221 = pneg %p165
      $region34: #{down_sampling.3} parent=11 // pred_check_branch
        %223 = sbr.rel (%p221) target = $region36
      $region35: #{down_sampling.3} parent=11 // pred_region
        _
      $region36: #{down_sampling.3} parent=11 // pred_fallthru
        _
    $region12: #{down_sampling.3} parent=5 // pred_fallthru
      _
    %p224 = scmp.lt.s32.totalorder %s13, 2
    // Predicated region
    $region37: #{down_sampling.3} parent=5 // pred_check
      %p225 = pneg %p224
    $region38: #{down_sampling.3} parent=5 // pred_check_branch
      %227 = sbr.rel (%p225) target = $region40
    $region39: #{down_sampling.3} parent=5 // pred_region
      // Predicated region
      $region41: #{down_sampling.3} parent=39 // pred_check
        %p228 = pneg %p33
      $region42: #{down_sampling.3} parent=39 // pred_check_branch
        %230 = sbr.rel (%p228) target = $region44
      $region43: #{down_sampling.3} parent=39 // pred_region
        %p231 = scmp.lt.s32.totalorder %s13, 1
        %s232 = scalar_select %p231, %s13, 1
        %s233 = smul.addr %s232, 4
        %s234 = smul.addr %s233, 8
        %s235 = scalar_lea.vmem %s0, %s234
      $region44: #{down_sampling.3} parent=39 // pred_fallthru
        _
    $region40: #{down_sampling.3} parent=5 // pred_fallthru
      _
    %p236 = scmp.le.s32.totalorder 1, %s13
    %p237 = scmp.lt.s32.totalorder %s13, 3
    %p238 = pnand %p236, %p237
    %p239 = pneg %p238
    // Predicated region
    $region45: #{down_sampling.3} parent=5 // pred_check
      _
    $region46: #{down_sampling.3} parent=5 // pred_check_branch
      %241 = sbr.rel (%p238) target = $region48
    $region47: #{down_sampling.3} parent=5 // pred_region
      %s242 = ssub.s32 %s13, 1
      %p243 = scmp.lt.s32.totalorder %s18, 1
      %s244 = scalar_select %p243, %s18, 1
      %s245 = smul.addr %s244, 4
      %s246 = smul.addr %s245, 8
      %s247 = scalar_lea.vmem %s0, %s246
      %p248 = pneg %p39
      %p249 = pneg %p36
      %p250 = pneg %p60
      %p251 = pneg %p57
      %p252 = pneg %p81
      %p253 = pneg %p78
      %p254 = pneg %p102
      %p255 = pneg %p99
      %p256 = pneg %p123
      %p257 = pneg %p120
      %p258 = pneg %p144
      %p259 = pneg %p141
      %p260 = pneg %p165
      %p261 = pneg %p162
      %p262 = pneg %p191
      %p263 = pneg %p188
      %p264 = scmp.lt.s32.totalorder %s18, 1
      %s265 = scalar_select %p264, %s18, 1
      %s266 = smul.addr %s265, 8
      %s267 = scalar_lea.vmem %s7, %s266
      %p268 = scmp.lt.s32.totalorder %s18, 1
      %s269 = scalar_select %p268, %s18, 1
      %s270 = smul.addr %s269, 4
      %s271 = smul.addr %s270, 8
      %s272 = scalar_lea.vmem %s0, %s271
      %p273 = scmp.lt.s32.totalorder %s18, 1
      %s274 = scalar_select %p273, %s18, 1
      %s275 = smul.addr %s274, 8
      %s276 = scalar_lea.vmem %s7, %s275
      %v277 = vld [vmem:[%s272] sm:$0xff]
      %v278 = vld [vmem:[%s272 + $0x8] sm:$0xff]
      %v279 = vld [vmem:[%s272 + $0x10] sm:$0xff]
      %v280 = vld [vmem:[%s272 + $0x18] sm:$0xff]
      %v281 = vld [vmem:[%s1] sm:$0xff]
      %v282 = vld [vmem:[%s1 + $0x8] sm:$0xff]
      %v283 = vld [vmem:[%s1 + $0x10] sm:$0xff]
      %v284 = vld [vmem:[%s1 + $0x18] sm:$0xff]
      %vm285 = vcmask 261120
      %v287 = vsel %vm285, %v277, 0
      %v290 = vsel %vm285, %v278, 0
      %v293 = vsel %vm285, %v279, 0
      %v296 = vsel %vm285, %v280, 0
      %298 = vmatprep.subr.mxu0 0.0
      %299 = vmatpush1.msra.mxu0 %v281
      %300 = vmatprep.subr.mxu0 0.0
      %301 = vmatpush1.msra.mxu0 %v282
      %302 = vmatprep.subr.mxu0 0.0
      %303 = vmatpush1.msra.mxu0 %v283
      %304 = vmatprep.subr.mxu0 0.0
      %305 = vmatpush1.msra.mxu0 %v284
      %306 = vmatprep.subr.mxu0 0.0
      %307 = vmatpush1.msra.mxu0 0.0
      %308 = vmatprep.subr.mxu0 0.0
      %309 = vmatpush1.msra.mxu0 0.0
      %310 = vmatprep.subr.mxu0 0.0
      %311 = vmatpush1.msra.mxu0 0.0
      %312 = vmatprep.subr.mxu0 0.0
      %313 = vmatpush1.msra.mxu0 0.0
      %314 = vmatprep.subr.mxu0 0.0
      %315 = vmatpush1.msra.mxu0 0.0
      %316 = vmatprep.subr.mxu0 0.0
      %317 = vmatpush1.msra.mxu0 0.0
      %318 = vmatprep.subr.mxu0 0.0
      %319 = vmatpush1.msra.mxu0 0.0
      %320 = vmatprep.subr.mxu0 0.0
      %321 = vmatpush1.msra.mxu0 0.0
      %322 = vmatprep.subr.mxu0 0.0
      %323 = vmatpush1.msra.mxu0 0.0
      %324 = vmatprep.subr.mxu0 0.0
      %325 = vmatpush1.msra.mxu0 0.0
      %326 = vmatprep.subr.mxu0 0.0
      %327 = vmatpush1.msra.mxu0 0.0
      %328 = vmatprep.subr.mxu0 0.0
      %329 = vmatpush1.msra.mxu0 0.0
      %330 = vmatprep.subr.mxu0 0.0
      %331 = vmatpush1.msra.mxu0 0.0
      %332 = vmatprep.subr.mxu0 0.0
      %333 = vmatpush1.msra.mxu0 0.0
      %334 = vmatprep.subr.mxu0 0.0
      %335 = vmatpush1.msra.mxu0 0.0
      %336 = vmatprep.subr.mxu0 0.0
      %337 = vmatpush1.msra.mxu0 0.0
      %338 = vmatprep.subr.mxu0 0.0
      %339 = vmatpush1.msra.mxu0 0.0
      %340 = vmatprep.subr.mxu0 0.0
      %341 = vmatpush1.msra.mxu0 0.0
      %342 = vmatprep.subr.mxu0 0.0
      %343 = vmatpush1.msra.mxu0 0.0
      %344 = vmatprep.subr.mxu0 0.0
      %345 = vmatpush1.msra.mxu0 0.0
      %346 = vmatprep.subr.mxu0 0.0
      %347 = vmatpush1.msra.mxu0 0.0
      %348 = vmatprep.subr.mxu0 0.0
      %349 = vmatpush1.msra.mxu0 0.0
      %350 = vmatprep.subr.mxu0 0.0
      %351 = vmatpush1.msra.mxu0 0.0
      %352 = vmatprep.subr.mxu0 0.0
      %353 = vmatpush1.msra.mxu0 0.0
      %354 = vmatprep.subr.mxu0 0.0
      %355 = vmatpush1.msra.mxu0 0.0
      %356 = vmatprep.subr.mxu0 0.0
      %357 = vmatpush1.msra.mxu0 0.0
      %358 = vmatprep.subr.mxu0 0.0
      %359 = vmatpush1.msra.mxu0 0.0
      %360 = vmatprep.subr.mxu0 0.0
      %361 = vmatpush1.msra.mxu0 0.0
      %362 = vmatprep.mubr.f32.mxu0 0.0
      %363 = vmatmul.mubr.f32.gmra.mrb[0].mxu0 %v287
      %v364 = vpop.f32.mrb[0].mxu0
      %v365 = vadd.f32 0.0, %v364
      %v366 = vpop.f32.mrb[0].mxu0
      %367 = vmatprep.mubr.f32.mxu0 0.0
      %368 = vmatmul.mubr.f32.gmra.mrb[0].mxu0 %v290
      %v369 = vpop.f32.mrb[0].mxu0
      %v370 = vadd.f32 0.0, %v369
      %v371 = vpop.f32.mrb[0].mxu0
      %372 = vmatprep.mubr.f32.mxu0 0.0
      %373 = vmatmul.mubr.f32.gmra.mrb[0].mxu0 %v293
      %v374 = vpop.f32.mrb[0].mxu0
      %v375 = vadd.f32 0.0, %v374
      %v376 = vpop.f32.mrb[0].mxu0
      %377 = vmatprep.mubr.f32.mxu0 0.0
      %378 = vmatmul.mubr.f32.gmra.mrb[0].mxu0 %v296
      %v379 = vpop.f32.mrb[0].mxu0
      %v380 = vadd.f32 0.0, %v379
      %v381 = vpop.f32.mrb[0].mxu0
      %382 = vdwg.mxu0
      %v383 = vld [vmem:[%s2] sm:$0xff]
      %v384 = vld [vmem:[%s2 + $0x8] sm:$0xff]
      %v385 = vld [vmem:[%s2 + $0x10] sm:$0xff]
      %v386 = vld [vmem:[%s2 + $0x18] sm:$0xff]
      %387 = vmatprep.subr.mxu0 0.0
      %388 = vmatpush1.msra.mxu0 %v383
      %389 = vmatprep.subr.mxu0 0.0
      %390 = vmatpush1.msra.mxu0 %v384
      %391 = vmatprep.subr.mxu0 0.0
      %392 = vmatpush1.msra.mxu0 %v385
      %393 = vmatprep.subr.mxu0 0.0
      %394 = vmatpush1.msra.mxu0 %v386
      %395 = vmatprep.subr.mxu0 0.0
      %396 = vmatpush1.msra.mxu0 0.0
      %397 = vmatprep.subr.mxu0 0.0
      %398 = vmatpush1.msra.mxu0 0.0
      %399 = vmatprep.subr.mxu0 0.0
      %400 = vmatpush1.msra.mxu0 0.0
      %401 = vmatprep.subr.mxu0 0.0
      %402 = vmatpush1.msra.mxu0 0.0
      %403 = vmatprep.subr.mxu0 0.0
      %404 = vmatpush1.msra.mxu0 0.0
      %405 = vmatprep.subr.mxu0 0.0
      %406 = vmatpush1.msra.mxu0 0.0
      %407 = vmatprep.subr.mxu0 0.0
      %408 = vmatpush1.msra.mxu0 0.0
      %409 = vmatprep.subr.mxu0 0.0
      %410 = vmatpush1.msra.mxu0 0.0
      %411 = vmatprep.subr.mxu0 0.0
      %412 = vmatpush1.msra.mxu0 0.0
      %413 = vmatprep.subr.mxu0 0.0
      %414 = vmatpush1.msra.mxu0 0.0
      %415 = vmatprep.subr.mxu0 0.0
      %416 = vmatpush1.msra.mxu0 0.0
      %417 = vmatprep.subr.mxu0 0.0
      %418 = vmatpush1.msra.mxu0 0.0
      %419 = vmatprep.subr.mxu0 0.0
      %420 = vmatpush1.msra.mxu0 0.0
      %421 = vmatprep.subr.mxu0 0.0
      %422 = vmatpush1.msra.mxu0 0.0
      %423 = vmatprep.subr.mxu0 0.0
      %424 = vmatpush1.msra.mxu0 0.0
      %425 = vmatprep.subr.mxu0 0.0
      %426 = vmatpush1.msra.mxu0 0.0
      %427 = vmatprep.subr.mxu0 0.0
      %428 = vmatpush1.msra.mxu0 0.0
      %429 = vmatprep.subr.mxu0 0.0
      %430 = vmatpush1.msra.mxu0 0.0
      %431 = vmatprep.subr.mxu0 0.0
      %432 = vmatpush1.msra.mxu0 0.0
      %433 = vmatprep.subr.mxu0 0.0
      %434 = vmatpush1.msra.mxu0 0.0
      %435 = vmatprep.subr.mxu0 0.0
      %436 = vmatpush1.msra.mxu0 0.0
      %437 = vmatprep.subr.mxu0 0.0
      %438 = vmatpush1.msra.mxu0 0.0
      %439 = vmatprep.subr.mxu0 0.0
      %440 = vmatpush1.msra.mxu0 0.0
      %441 = vmatprep.subr.mxu0 0.0
      %442 = vmatpush1.msra.mxu0 0.0
      %443 = vmatprep.subr.mxu0 0.0
      %444 = vmatpush1.msra.mxu0 0.0
      %445 = vmatprep.subr.mxu0 0.0
      %446 = vmatpush1.msra.mxu0 0.0
      %447 = vmatprep.subr.mxu0 0.0
      %448 = vmatpush1.msra.mxu0 0.0
      %449 = vmatprep.subr.mxu0 0.0
      %450 = vmatpush1.msra.mxu0 0.0
      %451 = vmatprep.mubr.f32.mxu0 0.0
      %452 = vmatmul.mubr.f32.gmra.mrb[0].mxu0 %v287
      %v453 = vpop.f32.mrb[0].mxu0
      %v454 = vadd.f32 0.0, %v453
      %v455 = vpop.f32.mrb[0].mxu0
      %456 = vmatprep.mubr.f32.mxu0 0.0
      %457 = vmatmul.mubr.f32.gmra.mrb[0].mxu0 %v290
      %v458 = vpop.f32.mrb[0].mxu0
      %v459 = vadd.f32 0.0, %v458
      %v460 = vpop.f32.mrb[0].mxu0
      %461 = vmatprep.mubr.f32.mxu0 0.0
      %462 = vmatmul.mubr.f32.gmra.mrb[0].mxu0 %v293
      %v463 = vpop.f32.mrb[0].mxu0
      %v464 = vadd.f32 0.0, %v463
      %v465 = vpop.f32.mrb[0].mxu0
      %466 = vmatprep.mubr.f32.mxu0 0.0
      %467 = vmatmul.mubr.f32.gmra.mrb[0].mxu0 %v296
      %v468 = vpop.f32.mrb[0].mxu0
      %v469 = vadd.f32 0.0, %v468
      %v470 = vpop.f32.mrb[0].mxu0
      %471 = vdwg.mxu0
      %v472 = vmax.f32 %v365, %v454
      %v473 = vmax.f32 %v370, %v459
      %v474 = vmax.f32 %v375, %v464
      %v475 = vmax.f32 %v380, %v469
      %v476 = vld [vmem:[%s3] sm:$0xff]
      %v477 = vld [vmem:[%s3 + $0x8] sm:$0xff]
      %v478 = vld [vmem:[%s3 + $0x10] sm:$0xff]
      %v479 = vld [vmem:[%s3 + $0x18] sm:$0xff]
      %480 = vmatprep.subr.mxu0 0.0
      %481 = vmatpush1.msra.mxu0 %v476
      %482 = vmatprep.subr.mxu0 0.0
      %483 = vmatpush1.msra.mxu0 %v477
      %484 = vmatprep.subr.mxu0 0.0
      %485 = vmatpush1.msra.mxu0 %v478
      %486 = vmatprep.subr.mxu0 0.0
      %487 = vmatpush1.msra.mxu0 %v479
      %488 = vmatprep.subr.mxu0 0.0
      %489 = vmatpush1.msra.mxu0 0.0
      %490 = vmatprep.subr.mxu0 0.0
      %491 = vmatpush1.msra.mxu0 0.0
      %492 = vmatprep.subr.mxu0 0.0
      %493 = vmatpush1.msra.mxu0 0.0
      %494 = vmatprep.subr.mxu0 0.0
      %495 = vmatpush1.msra.mxu0 0.0
      %496 = vmatprep.subr.mxu0 0.0
      %497 = vmatpush1.msra.mxu0 0.0
      %498 = vmatprep.subr.mxu0 0.0
      %499 = vmatpush1.msra.mxu0 0.0
      %500 = vmatprep.subr.mxu0 0.0
      %501 = vmatpush1.msra.mxu0 0.0
      %502 = vmatprep.subr.mxu0 0.0
      %503 = vmatpush1.msra.mxu0 0.0
      %504 = vmatprep.subr.mxu0 0.0
      %505 = vmatpush1.msra.mxu0 0.0
      %506 = vmatprep.subr.mxu0 0.0
      %507 = vmatpush1.msra.mxu0 0.0
      %508 = vmatprep.subr.mxu0 0.0
      %509 = vmatpush1.msra.mxu0 0.0
      %510 = vmatprep.subr.mxu0 0.0
      %511 = vmatpush1.msra.mxu0 0.0
      %512 = vmatprep.subr.mxu0 0.0
      %513 = vmatpush1.msra.mxu0 0.0
      %514 = vmatprep.subr.mxu0 0.0
      %515 = vmatpush1.msra.mxu0 0.0
      %516 = vmatprep.subr.mxu0 0.0
      %517 = vmatpush1.msra.mxu0 0.0
      %518 = vmatprep.subr.mxu0 0.0
      %519 = vmatpush1.msra.mxu0 0.0
      %520 = vmatprep.subr.mxu0 0.0
      %521 = vmatpush1.msra.mxu0 0.0
      %522 = vmatprep.subr.mxu0 0.0
      %523 = vmatpush1.msra.mxu0 0.0
      %524 = vmatprep.subr.mxu0 0.0
      %525 = vmatpush1.msra.mxu0 0.0
      %526 = vmatprep.subr.mxu0 0.0
      %527 = vmatpush1.msra.mxu0 0.0
      %528 = vmatprep.subr.mxu0 0.0
      %529 = vmatpush1.msra.mxu0 0.0
      %530 = vmatprep.subr.mxu0 0.0
      %531 = vmatpush1.msra.mxu0 0.0
      %532 = vmatprep.subr.mxu0 0.0
      %533 = vmatpush1.msra.mxu0 0.0
      %534 = vmatprep.subr.mxu0 0.0
      %535 = vmatpush1.msra.mxu0 0.0
      %536 = vmatprep.subr.mxu0 0.0
      %537 = vmatpush1.msra.mxu0 0.0
      %538 = vmatprep.subr.mxu0 0.0
      %539 = vmatpush1.msra.mxu0 0.0
      %540 = vmatprep.subr.mxu0 0.0
      %541 = vmatpush1.msra.mxu0 0.0
      %542 = vmatprep.subr.mxu0 0.0
      %543 = vmatpush1.msra.mxu0 0.0
      %544 = vmatprep.mubr.f32.mxu0 0.0
      %545 = vmatmul.mubr.f32.gmra.mrb[0].mxu0 %v287
      %v546 = vpop.f32.mrb[0].mxu0
      %v547 = vadd.f32 0.0, %v546
      %v548 = vpop.f32.mrb[0].mxu0
      %549 = vmatprep.mubr.f32.mxu0 0.0
      %550 = vmatmul.mubr.f32.gmra.mrb[0].mxu0 %v290
      %v551 = vpop.f32.mrb[0].mxu0
      %v552 = vadd.f32 0.0, %v551
      %v553 = vpop.f32.mrb[0].mxu0
      %554 = vmatprep.mubr.f32.mxu0 0.0
      %555 = vmatmul.mubr.f32.gmra.mrb[0].mxu0 %v293
      %v556 = vpop.f32.mrb[0].mxu0
      %v557 = vadd.f32 0.0, %v556
      %v558 = vpop.f32.mrb[0].mxu0
      %559 = vmatprep.mubr.f32.mxu0 0.0
      %560 = vmatmul.mubr.f32.gmra.mrb[0].mxu0 %v296
      %v561 = vpop.f32.mrb[0].mxu0
      %v562 = vadd.f32 0.0, %v561
      %v563 = vpop.f32.mrb[0].mxu0
      %564 = vdwg.mxu0
      %v565 = vld [vmem:[%s4] sm:$0xff]
      %v566 = vld [vmem:[%s4 + $0x8] sm:$0xff]
      %v567 = vld [vmem:[%s4 + $0x10] sm:$0xff]
      %v568 = vld [vmem:[%s4 + $0x18] sm:$0xff]
      %569 = vmatprep.subr.mxu0 0.0
      %570 = vmatpush1.msra.mxu0 %v565
      %571 = vmatprep.subr.mxu0 0.0
      %572 = vmatpush1.msra.mxu0 %v566
      %573 = vmatprep.subr.mxu0 0.0
      %574 = vmatpush1.msra.mxu0 %v567
      %575 = vmatprep.subr.mxu0 0.0
      %576 = vmatpush1.msra.mxu0 %v568
      %577 = vmatprep.subr.mxu0 0.0
      %578 = vmatpush1.msra.mxu0 0.0
      %579 = vmatprep.subr.mxu0 0.0
      %580 = vmatpush1.msra.mxu0 0.0
      %581 = vmatprep.subr.mxu0 0.0
      %582 = vmatpush1.msra.mxu0 0.0
      %583 = vmatprep.subr.mxu0 0.0
      %584 = vmatpush1.msra.mxu0 0.0
      %585 = vmatprep.subr.mxu0 0.0
      %586 = vmatpush1.msra.mxu0 0.0
      %587 = vmatprep.subr.mxu0 0.0
      %588 = vmatpush1.msra.mxu0 0.0
      %589 = vmatprep.subr.mxu0 0.0
      %590 = vmatpush1.msra.mxu0 0.0
      %591 = vmatprep.subr.mxu0 0.0
      %592 = vmatpush1.msra.mxu0 0.0
      %593 = vmatprep.subr.mxu0 0.0
      %594 = vmatpush1.msra.mxu0 0.0
      %595 = vmatprep.subr.mxu0 0.0
      %596 = vmatpush1.msra.mxu0 0.0
      %597 = vmatprep.subr.mxu0 0.0
      %598 = vmatpush1.msra.mxu0 0.0
      %599 = vmatprep.subr.mxu0 0.0
      %600 = vmatpush1.msra.mxu0 0.0
      %601 = vmatprep.subr.mxu0 0.0
      %602 = vmatpush1.msra.mxu0 0.0
      %603 = vmatprep.subr.mxu0 0.0
      %604 = vmatpush1.msra.mxu0 0.0
      %605 = vmatprep.subr.mxu0 0.0
      %606 = vmatpush1.msra.mxu0 0.0
      %607 = vmatprep.subr.mxu0 0.0
      %608 = vmatpush1.msra.mxu0 0.0
      %609 = vmatprep.subr.mxu0 0.0
      %610 = vmatpush1.msra.mxu0 0.0
      %611 = vmatprep.subr.mxu0 0.0
      %612 = vmatpush1.msra.mxu0 0.0
      %613 = vmatprep.subr.mxu0 0.0
      %614 = vmatpush1.msra.mxu0 0.0
      %615 = vmatprep.subr.mxu0 0.0
      %616 = vmatpush1.msra.mxu0 0.0
      %617 = vmatprep.subr.mxu0 0.0
      %618 = vmatpush1.msra.mxu0 0.0
      %619 = vmatprep.subr.mxu0 0.0
      %620 = vmatpush1.msra.mxu0 0.0
      %621 = vmatprep.subr.mxu0 0.0
      %622 = vmatpush1.msra.mxu0 0.0
      %623 = vmatprep.subr.mxu0 0.0
      %624 = vmatpush1.msra.mxu0 0.0
      %625 = vmatprep.subr.mxu0 0.0
      %626 = vmatpush1.msra.mxu0 0.0
      %627 = vmatprep.subr.mxu0 0.0
      %628 = vmatpush1.msra.mxu0 0.0
      %629 = vmatprep.subr.mxu0 0.0
      %630 = vmatpush1.msra.mxu0 0.0
      %631 = vmatprep.subr.mxu0 0.0
      %632 = vmatpush1.msra.mxu0 0.0
      %633 = vmatprep.mubr.f32.mxu0 0.0
      %634 = vmatmul.mubr.f32.gmra.mrb[0].mxu0 %v287
      %v635 = vpop.f32.mrb[0].mxu0
      %v636 = vadd.f32 0.0, %v635
      %v637 = vpop.f32.mrb[0].mxu0
      %638 = vmatprep.mubr.f32.mxu0 0.0
      %639 = vmatmul.mubr.f32.gmra.mrb[0].mxu0 %v290
      %v640 = vpop.f32.mrb[0].mxu0
      %v641 = vadd.f32 0.0, %v640
      %v642 = vpop.f32.mrb[0].mxu0
      %643 = vmatprep.mubr.f32.mxu0 0.0
      %644 = vmatmul.mubr.f32.gmra.mrb[0].mxu0 %v293
      %v645 = vpop.f32.mrb[0].mxu0
      %v646 = vadd.f32 0.0, %v645
      %v647 = vpop.f32.mrb[0].mxu0
      %648 = vmatprep.mubr.f32.mxu0 0.0
      %649 = vmatmul.mubr.f32.gmra.mrb[0].mxu0 %v296
      %v650 = vpop.f32.mrb[0].mxu0
      %v651 = vadd.f32 0.0, %v650
      %v652 = vpop.f32.mrb[0].mxu0
      %653 = vdwg.mxu0
      %v654 = vmax.f32 %v547, %v636
      %v655 = vmax.f32 %v552, %v641
      %v656 = vmax.f32 %v557, %v646
      %v657 = vmax.f32 %v562, %v651
      %v658 = vmax.f32 %v472, %v654
      %v659 = vmax.f32 %v473, %v655
      %v660 = vmax.f32 %v474, %v656
      %v661 = vmax.f32 %v475, %v657
      %v666 = vrot.slane %v659, 7
      %vm667 = vcmask 1041409
      %v668 = vsel %vm667, %v666, %v658
      %v669 = vrot.slane %v660, 6
      %vm670 = vcmask 1042434
      %v671 = vsel %vm670, %v669, %v668
      %v672 = vrot.slane %v661, 5
      %vm673 = vcmask 1043459
      %v674 = vsel %vm673, %v672, %v671
      %675 = vrot.lane.b32.xlu0 %v674, 10
      %v676 = vpop.permute.xlu0 %675
      %v678 = vrot.slane %v658, 1
      %v679 = vsel %vm667, %v659, %v678
      %v680 = vrot.slane %v660, 7
      %v681 = vsel %vm670, %v680, %v679
      %v682 = vrot.slane %v661, 6
      %v683 = vsel %vm673, %v682, %v681
      %684 = vrot.lane.b32.xlu0 %v683, 20
      %v685 = vpop.permute.xlu0 %684
      %v687 = vrot.slane %v658, 2
      %v688 = vrot.slane %v659, 1
      %v689 = vsel %vm667, %v688, %v687
      %v690 = vsel %vm670, %v660, %v689
      %v691 = vrot.slane %v661, 7
      %v692 = vsel %vm673, %v691, %v690
      %693 = vrot.lane.b32.xlu0 %v692, 30
      %v694 = vpop.permute.xlu0 %693
      %v696 = vrot.slane %v658, 3
      %v697 = vrot.slane %v659, 2
      %v698 = vsel %vm667, %v697, %v696
      %v699 = vrot.slane %v660, 1
      %v700 = vsel %vm670, %v699, %v698
      %v701 = vsel %vm673, %v661, %v700
      %702 = vrot.lane.b32.xlu0 %v701, 40
      %v703 = vpop.permute.xlu0 %702
      %v705 = vrot.slane %v658, 4
      %v706 = vrot.slane %v659, 3
      %v707 = vsel %vm667, %v706, %v705
      %v708 = vrot.slane %v660, 2
      %v709 = vsel %vm670, %v708, %v707
      %v710 = vrot.slane %v661, 1
      %v711 = vsel %vm673, %v710, %v709
      %712 = vrot.lane.b32.xlu0 %v711, 50
      %v713 = vpop.permute.xlu0 %712
      %v715 = vrot.slane %v658, 5
      %v716 = vrot.slane %v659, 4
      %v717 = vsel %vm667, %v716, %v715
      %v718 = vrot.slane %v660, 3
      %v719 = vsel %vm670, %v718, %v717
      %v720 = vrot.slane %v661, 2
      %v721 = vsel %vm673, %v720, %v719
      %722 = vrot.lane.b32.xlu0 %v721, 60
      %v723 = vpop.permute.xlu0 %722
      %v725 = vrot.slane %v658, 6
      %v726 = vrot.slane %v659, 5
      %v727 = vsel %vm667, %v726, %v725
      %v728 = vrot.slane %v660, 4
      %v729 = vsel %vm670, %v728, %v727
      %v730 = vrot.slane %v661, 3
      %v731 = vsel %vm673, %v730, %v729
      %732 = vrot.lane.b32.xlu0 %v731, 70
      %v733 = vpop.permute.xlu0 %732
      %v735 = vrot.slane %v658, 7
      %v736 = vrot.slane %v659, 6
      %v737 = vsel %vm667, %v736, %v735
      %v738 = vrot.slane %v660, 5
      %v739 = vsel %vm670, %v738, %v737
      %v740 = vrot.slane %v661, 4
      %v741 = vsel %vm673, %v740, %v739
      %742 = vrot.lane.b32.xlu0 %v741, 80
      %v743 = vpop.permute.xlu0 %742
      %vm745 = vcmask 80896
      %v746 = vsel %vm745, 0.0, %v676
      %vm747 = vcmask 162816
      %v748 = vsel %vm747, %v746, %v685
      %vm749 = vcmask 244736
      %v750 = vsel %vm749, %v748, %v694
      %vm751 = vcmask 326656
      %v752 = vsel %vm751, %v750, %v703
      %vm753 = vcmask 408576
      %v754 = vsel %vm753, %v752, %v713
      %vm755 = vcmask 490496
      %v756 = vsel %vm755, %v754, %v723
      %vm757 = vcmask 572416
      %v758 = vsel %vm757, %v756, %v733
      %vm759 = vcmask 654336
      %v760 = vsel %vm759, %v758, %v743
      %vm761 = vcmask 736256
      %v762 = vsel %vm761, %v760, 0.0
      %v765 = vrot.slane %v762, 4
      %v766 = vrot.slane 0.0, 4
      %767 = vrot.lane.b32.xlu0 %v765, 127
      %v768 = vpop.permute.xlu0 %767
      %769 = vrot.lane.b32.xlu0 %v766, 127
      %v770 = vpop.permute.xlu0 %769
      %vm771 = vcmask 1039360
      %v772 = vsel %vm771, %v768, %v770
      %774 = vrot.lane.b32.xlu0 %v762, 126
      %v775 = vpop.permute.xlu0 %774
      %776 = vrot.lane.b32.xlu0 0.0, 126
      %v777 = vpop.permute.xlu0 %776
      %vm778 = vcmask 1031168
      %v779 = vsel %vm778, %v775, %v777
      %781 = vrot.lane.b32.xlu0 %v765, 118
      %v782 = vpop.permute.xlu0 %781
      %783 = vrot.lane.b32.xlu0 %v766, 118
      %v784 = vpop.permute.xlu0 %783
      %vm785 = vcmask 965632
      %v786 = vsel %vm785, %v782, %v784
      %788 = vrot.lane.b32.xlu0 %v762, 117
      %v789 = vpop.permute.xlu0 %788
      %790 = vrot.lane.b32.xlu0 0.0, 117
      %v791 = vpop.permute.xlu0 %790
      %vm792 = vcmask 957440
      %v793 = vsel %vm792, %v789, %v791
      %795 = vrot.lane.b32.xlu0 %v765, 116
      %v796 = vpop.permute.xlu0 %795
      %797 = vrot.lane.b32.xlu0 %v766, 116
      %v798 = vpop.permute.xlu0 %797
      %vm799 = vcmask 949248
      %v800 = vsel %vm799, %v796, %v798
      %802 = vrot.lane.b32.xlu0 %v762, 108
      %v803 = vpop.permute.xlu0 %802
      %804 = vrot.lane.b32.xlu0 0.0, 108
      %v805 = vpop.permute.xlu0 %804
      %vm806 = vcmask 883712
      %v807 = vsel %vm806, %v803, %v805
      %809 = vrot.lane.b32.xlu0 %v765, 107
      %v810 = vpop.permute.xlu0 %809
      %811 = vrot.lane.b32.xlu0 %v766, 107
      %v812 = vpop.permute.xlu0 %811
      %vm813 = vcmask 875520
      %v814 = vsel %vm813, %v810, %v812
      %816 = vrot.lane.b32.xlu0 %v762, 106
      %v817 = vpop.permute.xlu0 %816
      %818 = vrot.lane.b32.xlu0 0.0, 106
      %v819 = vpop.permute.xlu0 %818
      %vm820 = vcmask 867328
      %v821 = vsel %vm820, %v817, %v819
      %vm822 = vcmask 1043456
      %v823 = vsel %vm822, %v762, %v772
      %v824 = vsel %vm822, %v779, %v786
      %v825 = vsel %vm822, %v793, %v800
      %v826 = vsel %vm822, %v807, %v814
      %v827 = vld [vmem:[%s5] sm:$0xff]
      %vm828 = vcmask 293888
      %v830 = vsel %vm828, %v827, 0
      %v832 = vsel %vm822, %v821, 0
      %834 = vmatprep.subr.mxu0 0.0
      %835 = vmatpush1.msra.mxu0 %v823
      %836 = vmatprep.subr.mxu0 0.0
      %837 = vmatpush1.msra.mxu0 %v824
      %838 = vmatprep.subr.mxu0 0.0
      %839 = vmatpush1.msra.mxu0 %v825
      %840 = vmatprep.subr.mxu0 0.0
      %841 = vmatpush1.msra.mxu0 %v826
      %842 = vmatprep.subr.mxu0 0.0
      %843 = vmatpush1.msra.mxu0 %v832
      %844 = vmatprep.subr.mxu0 0.0
      %845 = vmatpush1.msra.mxu0 0.0
      %846 = vmatprep.subr.mxu0 0.0
      %847 = vmatpush1.msra.mxu0 0.0
      %848 = vmatprep.subr.mxu0 0.0
      %849 = vmatpush1.msra.mxu0 0.0
      %850 = vmatprep.subr.mxu0 0.0
      %851 = vmatpush1.msra.mxu0 0.0
      %852 = vmatprep.subr.mxu0 0.0
      %853 = vmatpush1.msra.mxu0 0.0
      %854 = vmatprep.subr.mxu0 0.0
      %855 = vmatpush1.msra.mxu0 0.0
      %856 = vmatprep.subr.mxu0 0.0
      %857 = vmatpush1.msra.mxu0 0.0
      %858 = vmatprep.subr.mxu0 0.0
      %859 = vmatpush1.msra.mxu0 0.0
      %860 = vmatprep.subr.mxu0 0.0
      %861 = vmatpush1.msra.mxu0 0.0
      %862 = vmatprep.subr.mxu0 0.0
      %863 = vmatpush1.msra.mxu0 0.0
      %864 = vmatprep.subr.mxu0 0.0
      %865 = vmatpush1.msra.mxu0 0.0
      %866 = vmatprep.subr.mxu0 0.0
      %867 = vmatpush1.msra.mxu0 0.0
      %868 = vmatprep.subr.mxu0 0.0
      %869 = vmatpush1.msra.mxu0 0.0
      %870 = vmatprep.subr.mxu0 0.0
      %871 = vmatpush1.msra.mxu0 0.0
      %872 = vmatprep.subr.mxu0 0.0
      %873 = vmatpush1.msra.mxu0 0.0
      %874 = vmatprep.subr.mxu0 0.0
      %875 = vmatpush1.msra.mxu0 0.0
      %876 = vmatprep.subr.mxu0 0.0
      %877 = vmatpush1.msra.mxu0 0.0
      %878 = vmatprep.subr.mxu0 0.0
      %879 = vmatpush1.msra.mxu0 0.0
      %880 = vmatprep.subr.mxu0 0.0
      %881 = vmatpush1.msra.mxu0 0.0
      %882 = vmatprep.subr.mxu0 0.0
      %883 = vmatpush1.msra.mxu0 0.0
      %884 = vmatprep.subr.mxu0 0.0
      %885 = vmatpush1.msra.mxu0 0.0
      %886 = vmatprep.subr.mxu0 0.0
      %887 = vmatpush1.msra.mxu0 0.0
      %888 = vmatprep.subr.mxu0 0.0
      %889 = vmatpush1.msra.mxu0 0.0
      %890 = vmatprep.subr.mxu0 0.0
      %891 = vmatpush1.msra.mxu0 0.0
      %892 = vmatprep.subr.mxu0 0.0
      %893 = vmatpush1.msra.mxu0 0.0
      %894 = vmatprep.subr.mxu0 0.0
      %895 = vmatpush1.msra.mxu0 0.0
      %896 = vmatprep.subr.mxu0 0.0
      %897 = vmatpush1.msra.mxu0 0.0
      %898 = vmatprep.mubr.f32.mxu0 0.0
      %899 = vmatmul.mubr.f32.gmra.mrb[0].mxu0 %v830
      %v900 = vpop.f32.mrb[0].mxu0
      %v901 = vadd.f32 0.0, %v900
      %v902 = vpop.f32.mrb[0].mxu0
      %903 = vdwg.mxu0
      %v904 = vld [vmem:[%s6] sm:$0x1]
      %v906 = vlaneseq
      %v907 = vshrl.u32 %v906, 7
      %v908 = vsub.s32 0, %v907
      %v909 = vrot.slane %v904, %v908
      %v911 = vmul.f32 %v901, %v909
      %912 = vst [vmem:[%s276] sm:$0xff] %v911
      %vm913 = vcmask 637952
      %v914 = vsel %vm913, %v911, 0.0
      %915 = vadd.xlane.f32.xlu0 %v914
      %v916 = vpop.xlane.xlu0 %915
      %v917 = vmul.f32 %v911, %v911
      %v918 = vsel %vm913, %v917, 0.0
      %919 = vadd.xlane.f32.xlu0 %v918
      %v920 = vpop.xlane.xlu0 %919
      %vm921 = vcmask 7168
      %v922 = vsel %vm921, %v916, %v920
      %924 = vrot.lane.b32.xlu0 %v922, 78
      %v925 = vpop.permute.xlu0 %924
      %vm927 = vcmask 654960
      %928 = vst.msk [vmem:[%s276] sm:$0xff] %vm927, %v925
      %p929 = scmp.lt.s32.totalorder %s18, 1
      %s930 = scalar_select %p929, %s18, 1
      %s931 = smul.addr %s930, 8
      %s932 = scalar_lea.vmem %s7, %s931
      // Predicated region
      $region49: #{down_sampling.3} parent=47 // pred_check
        %p933 = pneg %p188
      $region50: #{down_sampling.3} parent=47 // pred_check_branch
        %935 = sbr.rel (%p933) target = $region52
      $region51: #{down_sampling.3} parent=47 // pred_region
        _
      $region52: #{down_sampling.3} parent=47 // pred_fallthru
        _
    $region48: #{down_sampling.3} parent=5 // pred_fallthru
      _
    %p936 = scmp.le.s32.totalorder 2, %s13
    // Predicated region
    $region53: #{down_sampling.3} parent=5 // pred_check
      %p937 = pneg %p936
    $region54: #{down_sampling.3} parent=5 // pred_check_branch
      %939 = sbr.rel (%p937) target = $region56
    $region55: #{down_sampling.3} parent=5 // pred_region
      %s940 = ssub.s32 %s13, 2
      // Predicated region
      $region57: #{down_sampling.3} parent=55 // pred_check
        %p941 = pneg %p194
      $region58: #{down_sampling.3} parent=55 // pred_check_branch
        %943 = sbr.rel (%p941) target = $region60
      $region59: #{down_sampling.3} parent=55 // pred_region
        %p944 = scmp.lt.s32.totalorder %s19, 1
        %s945 = scalar_select %p944, %s19, 1
        %s946 = smul.addr %s945, 8
        %s947 = scalar_lea.vmem %s7, %s946
      $region60: #{down_sampling.3} parent=55 // pred_fallthru
        _
    $region56: #{down_sampling.3} parent=5 // pred_fallthru
      _
  $region6: #{down_sampling.3} parent=0 // loop_footer
    %s17 = sadd.s32 1, %s13
  $region7: #{down_sampling.3} parent=0 // loop_footer_branch
    %12 = sbr.rel target = $region3
  $region8: #{down_sampling.3} parent=0 // loop_exit
    _

</llo_original>
